<compile_context>
chip_gen: v7x
topology: tpu7x:2x2x1
jax: 0.10.0
libtpu: 0.0.40
codegen_flags: <defaults>
</compile_context>

<pallas_src>
from functools import partial

import jax
import jax.numpy as jnp
import numpy as np
from jax.experimental import pallas as pl
from jax.experimental.pallas import tpu as pltpu


# ----------------------------- Pallas kernel ---------------------------------
def roi_heads_kernel(seed_aug_ref, seed_feat_ref, orig_aug_ref, voted_ref, base_ref,
                     w1a_ref, w1b_ref, b1_ref, w2_ref, b2_ref, wcb_ref, bcb_ref,
                     out_ref, *, num_classes_p1):
    kp1 = num_classes_p1

    # ---- pooler: distance-softmax attention of seed feats onto origins ------
    # neg_d2 = 2*o.s - |s|^2 via augmented coords; the |o|^2 term is constant
    # along the softmax axis and cancels exactly, so it is dropped (no in-kernel
    # transpose needed).  Distance/softmax math stays in f32.
    neg_d2 = jnp.einsum('rd,nd->rn', orig_aug_ref[...], seed_aug_ref[...],
                        preferred_element_type=jnp.float32)              # (TR, N)
    m = jnp.max(neg_d2, axis=-1, keepdims=True)
    p = jnp.exp(neg_d2 - m)
    attn = (p * pl.reciprocal(jnp.sum(p, axis=-1, keepdims=True), approx=True)
            ).astype(jnp.bfloat16)
    pooled_bf = jnp.dot(attn, seed_feat_ref[...],                        # bf16 MXU
                        preferred_element_type=jnp.float32
                        ).astype(jnp.bfloat16)                           # (TR, Cs)

    # ---- box head MLP (bf16 matmul inputs, f32 accumulation, H padded to 128)
    # feats = cat([voted, pooled]) is replaced by two accumulating matmuls
    # (at production Cv/Cs >= 128 each contraction already fills the MXU).
    h1 = jnp.maximum(
        jnp.dot(voted_ref[...], w1a_ref[...], preferred_element_type=jnp.float32)
        + jnp.dot(pooled_bf, w1b_ref[...], preferred_element_type=jnp.float32)
        + b1_ref[...], 0.0).astype(jnp.bfloat16)
    h2 = jnp.maximum(
        jnp.dot(h1, w2_ref[...], preferred_element_type=jnp.float32)
        + b2_ref[...], 0.0).astype(jnp.bfloat16)

    # fused cls+box prediction head (weights zero-padded to the 128-lane slab):
    #   [0:kp1]            cls logits
    #   [kp1:kp1+6]        box deltas
    #   [kp1+6:2kp1+6]     cls logits (duplicate columns -> softmax'd in place)
    #   [2kp1+6:2kp1+12]   signed deltas (-d_lbd, +d_rfu) for the box corners
    raw = jnp.dot(h2, wcb_ref[...],
                  preferred_element_type=jnp.float32) + bcb_ref[...]     # (TR, PACK)

    # class softmax computed at full lane width directly in its output lanes
    lane = jax.lax.broadcasted_iota(jnp.int32, raw.shape, 1)
    is_score = (lane >= kp1 + 6) & (lane < 2 * kp1 + 6)
    masked = jnp.where(is_score, raw, -1e30)
    cm = jnp.max(masked, axis=-1, keepdims=True)
    ce = jnp.exp(masked - cm)                       # exactly 0 outside score lanes
    scores = ce / jnp.sum(ce, axis=-1, keepdims=True)   # exact: scores sum to 1

    # one dense, unmasked store of the composed slab:
    #   box lanes = signed deltas (in raw) + per-row base (origins -/+ proposal)
    out_ref[...] = jnp.where(is_score, scores, raw) + base_ref[...]


# ------------------------------- wrapper --------------------------------------
def standard_roi_heads_forward(seed_xyz, seed_features, voted_features,
                               inds, origins, proposal_boxes, params):
    """
    seed_xyz       : (B, N, 3)  float32
    seed_features  : (B, Cs, N) float32   (PyTorch NCR layout)
    voted_features : (B, Cv, N) float32   (PyTorch NCR layout)
    inds           : (B, R)     int32     (proposals_i.inds)
    origins        : (B, R, 3)  float32   (proposal_boxes.get('origins'))
    proposal_boxes : (B, R, 6)  float32   (XYZLBDRFU_ABS distances)
    """
    B, N, _ = seed_xyz.shape
    Cs = seed_features.shape[1]
    Cv = voted_features.shape[1]
    R = inds.shape[1]

    (w1, b1, w2, b2, wc, bc, wb, bb) = params
    H = w1.shape[1]
    Kp1 = wc.shape[1]
    Hp = ((H + 127) // 128) * 128                        # MXU-filling hidden width
    PACK = max(128, ((2 * Kp1 + 12 + 127) // 128) * 128)  # lane-dense output width
    box0 = 2 * Kp1 + 6

    TR = 128 if R % 128 == 0 else R                      # per-batch row tile
    assert R % TR == 0

    # --- XLA-side glue: layout, gather, coordinate augmentation ---------------
    # bf16 cast BEFORE the transpose halves that HBM->HBM pass.
    seed_feat_t = jnp.transpose(seed_features.astype(jnp.bfloat16), (0, 2, 1))  # (B,N,Cs)
    voted_g = jax.vmap(lambda vf, idx: vf.T[idx])(voted_features, inds
                                                  ).astype(jnp.bfloat16)        # (B,R,Cv)

    seed_aug = jnp.concatenate(
        [seed_xyz, -jnp.sum(seed_xyz * seed_xyz, axis=-1, keepdims=True)], axis=-1)  # (B,N,4)
    orig_aug = jnp.concatenate(
        [2.0 * origins, jnp.ones((B, R, 1), jnp.float32)], axis=-1)                  # (B,R,4)

    # per-row additive base for the packed slab: box-corner base term
    # (origins -/+ proposal distances) at its lane range, zeros elsewhere.
    base = jnp.zeros((B, R, PACK), jnp.float32)
    base = base.at[..., box0:box0 + 3].set(origins - proposal_boxes[..., :3])
    base = base.at[..., box0 + 3:box0 + 6].set(origins + proposal_boxes[..., 3:])

    # --- weight packing (zero-padding is mathematically exact) ----------------
    w1p = jnp.zeros((Cv + Cs, Hp), jnp.float32).at[:, :H].set(w1)
    w1a = w1p[:Cv].astype(jnp.bfloat16)
    w1b = w1p[Cv:].astype(jnp.bfloat16)
    b1p = jnp.zeros((1, Hp), jnp.float32).at[0, :H].set(b1)
    w2p = jnp.zeros((Hp, Hp), jnp.float32).at[:H, :H].set(w2).astype(jnp.bfloat16)
    b2p = jnp.zeros((1, Hp), jnp.float32).at[0, :H].set(b2)

    # fused cls+box head: cls | deltas | cls(dup) | signed deltas, rest zero
    wcb = jnp.zeros((Hp, PACK), jnp.float32)
    wcb = wcb.at[:H, :Kp1].set(wc).at[:H, Kp1:Kp1 + 6].set(wb)
    wcb = wcb.at[:H, Kp1 + 6:2 * Kp1 + 6].set(wc)
    wcb = wcb.at[:H, box0:box0 + 3].set(-wb[:, :3]).at[:H, box0 + 3:box0 + 6].set(wb[:, 3:])
    wcb = wcb.astype(jnp.bfloat16)
    bcb = jnp.zeros((1, PACK), jnp.float32)
    bcb = bcb.at[0, :Kp1].set(bc).at[0, Kp1:Kp1 + 6].set(bb)
    bcb = bcb.at[0, Kp1 + 6:2 * Kp1 + 6].set(bc)
    bcb = bcb.at[0, box0:box0 + 3].set(-bb[:3]).at[0, box0 + 3:box0 + 6].set(bb[3:])

    # --- pallas_call: grid (batch, row-tile), both axes parallel ---------------
    row_spec = lambda w: pl.BlockSpec((None, TR, w), lambda b, r: (b, r, 0))
    seed_spec = lambda w: pl.BlockSpec((None, N, w), lambda b, r: (b, 0, 0))
    w_spec = lambda s0, s1: pl.BlockSpec((s0, s1), lambda b, r: (0, 0))

    packed = pl.pallas_call(
        partial(roi_heads_kernel, num_classes_p1=Kp1),
        out_shape=jax.ShapeDtypeStruct((B, R, PACK), jnp.float32),
        grid_spec=pltpu.PrefetchScalarGridSpec(
            num_scalar_prefetch=0,
            grid=(B, R // TR),
            in_specs=[
                seed_spec(4),        # seed coords, augmented with -|s|^2
                seed_spec(Cs),       # seed features (bf16, point-major)
                row_spec(4),         # proposal origins, augmented with [2o, 1]
                row_spec(Cv),        # gathered voted features (bf16)
                row_spec(PACK),      # per-row additive base (box-corner term)
                w_spec(Cv, Hp), w_spec(Cs, Hp), w_spec(1, Hp),
                w_spec(Hp, Hp), w_spec(1, Hp),
                w_spec(Hp, PACK), w_spec(1, PACK),
            ],
            out_specs=row_spec(PACK),
        ),
        compiler_params=pltpu.CompilerParams(
            dimension_semantics=("parallel", "parallel"),
            vmem_limit_bytes=32 * 1024 * 1024,
        ),
    )(seed_aug, seed_feat_t, orig_aug, voted_g, base,
      w1a, w1b, b1p, w2p, b2p, wcb, bcb)

    cls_logits = packed[..., :Kp1]
    box_deltas = packed[..., Kp1:Kp1 + 6]
    scores = packed[..., Kp1 + 6:2 * Kp1 + 6]
    boxes = packed[..., box0:box0 + 6]
    return cls_logits, box_deltas, scores, boxes


# ------------------------------ reference -------------------------------------
def reference_forward(seed_xyz, seed_features, voted_features,
                      inds, origins, proposal_boxes, params):
    """Pure-JAX reference.  Mirrors the kernel's precision choices (bf16 matmul
    inputs, f32 accumulation) but uses the straightforward structure (direct
    squared distances, feature concat, separate cls/box heads, exact softmax)."""
    (w1, b1, w2, b2, wc, bc, wb, bb) = params
    bf = jnp.bfloat16

    seed_feat_t = jnp.transpose(seed_features, (0, 2, 1))
    voted_g = jax.vmap(lambda vf, idx: vf.T[idx])(voted_features, inds)

    d2 = jnp.sum((origins[:, :, None, :] - seed_xyz[:, None, :, :]) ** 2, axis=-1)
    attn = jax.nn.softmax(-d2, axis=-1)
    pooled = jnp.einsum('brn,bnc->brc', attn.astype(bf), seed_feat_t.astype(bf),
                        preferred_element_type=jnp.float32)
    feats = jnp.concatenate([voted_g, pooled], axis=-1).astype(bf)

    h1 = jax.nn.relu(jnp.dot(feats, w1.astype(bf),
                             preferred_element_type=jnp.float32) + b1)
    h2 = jax.nn.relu(jnp.dot(h1.astype(bf), w2.astype(bf),
                             preferred_element_type=jnp.float32) + b2)
    h2b = h2.astype(bf)
    cls_logits = jnp.dot(h2b, wc.astype(bf), preferred_element_type=jnp.float32) + bc
    box_deltas = jnp.dot(h2b, wb.astype(bf), preferred_element_type=jnp.float32) + bb
    scores = jax.nn.softmax(cls_logits, axis=-1)
    pred = proposal_boxes + box_deltas
    boxes = jnp.concatenate([origins - pred[..., :3], origins + pred[..., 3:]], axis=-1)
    return cls_logits, box_deltas, scores, boxes


# --------------------------------- main ----------------------------------------
if __name__ == "__main__":
    B, N, R = 2, 64, 32            # batch, num seed points, num proposals
    Cs, Cv, H = 32, 32, 64         # seed_feature_dim, voted channels, box-head hidden
    K = 8                          # num_classes
    Kp1 = K + 1

    key = jax.random.PRNGKey(0)
    ks = jax.random.split(key, 16)

    seed_xyz = jax.random.normal(ks[0], (B, N, 3), jnp.float32)
    seed_features = jax.random.normal(ks[1], (B, Cs, N), jnp.float32) * 0.5
    voted_features = jax.random.normal(ks[2], (B, Cv, N), jnp.float32) * 0.5
    inds = jax.random.randint(ks[3], (B, R), 0, N, jnp.int32)
    origins = jax.random.normal(ks[4], (B, R, 3), jnp.float32)
    proposal_boxes = jax.random.uniform(ks[5], (B, R, 6), jnp.float32, 0.1, 1.0)

    Cin = Cv + Cs
    params = (
        jax.random.normal(ks[6], (Cin, H), jnp.float32) * (1.0 / np.sqrt(Cin)),
        jax.random.normal(ks[7], (H,), jnp.float32) * 0.01,
        jax.random.normal(ks[8], (H, H), jnp.float32) * (1.0 / np.sqrt(H)),
        jax.random.normal(ks[9], (H,), jnp.float32) * 0.01,
        jax.random.normal(ks[10], (H, Kp1), jnp.float32) * (1.0 / np.sqrt(H)),
        jax.random.normal(ks[11], (Kp1,), jnp.float32) * 0.01,
        jax.random.normal(ks[12], (H, 6), jnp.float32) * (1.0 / np.sqrt(H)),
        jax.random.normal(ks[13], (6,), jnp.float32) * 0.01,
    )

    outs = standard_roi_heads_forward(seed_xyz, seed_features, voted_features,
                                      inds, origins, proposal_boxes, params)
    outs = jax.block_until_ready(outs)

    refs = reference_forward(seed_xyz, seed_features, voted_features,
                             inds, origins, proposal_boxes, params)
    # Tolerance reflects bf16 pooling/MLP matmul inputs + the approx pooler
    # reciprocal and augmented-coords distances interacting with bf16 rounding;
    # structural errors would be O(0.1) or larger.
    for o, r in zip(outs, refs):
        np.testing.assert_allclose(np.asarray(o), np.asarray(r), rtol=2e-2, atol=2e-2)

    print("KERNEL_OK")
</pallas_src>

<mosaic_0001>
module attributes {stable_mosaic.version = 11 : i64} {
  func.func @roi_heads_kernel(%arg0: i32, %arg1: i32, %arg2: memref<1x64x4xf32, #tpu.memory_space<vmem>>, %arg3: memref<1x64x32xbf16, #tpu.memory_space<vmem>>, %arg4: memref<1x32x4xf32, #tpu.memory_space<vmem>>, %arg5: memref<1x32x32xbf16, #tpu.memory_space<vmem>>, %arg6: memref<1x32x128xf32, #tpu.memory_space<vmem>>, %arg7: memref<32x128xbf16, #tpu.memory_space<vmem>>, %arg8: memref<32x128xbf16, #tpu.memory_space<vmem>>, %arg9: memref<1x128xf32, #tpu.memory_space<vmem>>, %arg10: memref<128x128xbf16, #tpu.memory_space<vmem>>, %arg11: memref<1x128xf32, #tpu.memory_space<vmem>>, %arg12: memref<128x128xbf16, #tpu.memory_space<vmem>>, %arg13: memref<1x128xf32, #tpu.memory_space<vmem>>, %arg14: memref<1x32x128xf32, #tpu.memory_space<vmem>>) attributes {dimension_semantics = [#tpu.dimension_semantics<parallel>, #tpu.dimension_semantics<parallel>], iteration_bounds = array<i64: 2, 1>, scalar_prefetch = 0 : i64, scratch_operands = 0 : i64, tpu.core_type = #tpu.core_type<tc>, window_params = [{transform_indices = @transform_0, window_bounds = array<i64: 1, 64, 4>}, {transform_indices = @transform_1, window_bounds = array<i64: 1, 64, 32>}, {transform_indices = @transform_2, window_bounds = array<i64: 1, 32, 4>}, {transform_indices = @transform_3, window_bounds = array<i64: 1, 32, 32>}, {transform_indices = @transform_4, window_bounds = array<i64: 1, 32, 128>}, {pipeline_mode = #tpu.pipeline_mode<synchronous>, transform_indices = @transform_5, window_bounds = array<i64: 32, 128>}, {pipeline_mode = #tpu.pipeline_mode<synchronous>, transform_indices = @transform_6, window_bounds = array<i64: 32, 128>}, {pipeline_mode = #tpu.pipeline_mode<synchronous>, transform_indices = @transform_7, window_bounds = array<i64: 1, 128>}, {pipeline_mode = #tpu.pipeline_mode<synchronous>, transform_indices = @transform_8, window_bounds = array<i64: 128, 128>}, {pipeline_mode = #tpu.pipeline_mode<synchronous>, transform_indices = @transform_9, window_bounds = array<i64: 1, 128>}, {pipeline_mode = #tpu.pipeline_mode<synchronous>, transform_indices = @transform_10, window_bounds = array<i64: 128, 128>}, {pipeline_mode = #tpu.pipeline_mode<synchronous>, transform_indices = @transform_11, window_bounds = array<i64: 1, 128>}, {transform_indices = @transform_12, window_bounds = array<i64: 1, 32, 128>}]} {
    %c0 = arith.constant 0 : index
    %c0_0 = arith.constant 0 : index
    %c0_1 = arith.constant 0 : index
    %0 = vector.load %arg4[%c0, %c0_0, %c0_1] : memref<1x32x4xf32, #tpu.memory_space<vmem>>, vector<1x32x4xf32>
    %1 = vector.shape_cast %0 : vector<1x32x4xf32> to vector<32x4xf32>
    %c0_2 = arith.constant 0 : index
    %c0_3 = arith.constant 0 : index
    %c0_4 = arith.constant 0 : index
    %2 = vector.load %arg2[%c0_2, %c0_3, %c0_4] : memref<1x64x4xf32, #tpu.memory_space<vmem>>, vector<1x64x4xf32>
    %3 = vector.shape_cast %2 : vector<1x64x4xf32> to vector<64x4xf32>
    "tpu.trace_start"() <{level = 10 : i32, message = "rd,nd->rn"}> : () -> ()
    %cst = arith.constant dense<0.000000e+00> : vector<32x64xf32>
    %4 = tpu.matmul %1, %3, %cst {dimension_numbers = #tpu.dot_dimension_numbers<[1], [1], [0], [0], [0, 0, 1, 0], [], []>} : vector<32x4xf32>, vector<64x4xf32>, vector<32x64xf32> -> vector<32x64xf32>
    "tpu.trace_stop"() : () -> ()
    %cst_5 = arith.constant dense<0xFF800000> : vector<32xf32>
    %5 = vector.multi_reduction <maximumf>, %4, %cst_5 [1] : vector<32x64xf32> to vector<32xf32>
    %6 = vector.shape_cast %5 : vector<32xf32> to vector<32x1xf32>
    %7 = vector.broadcast %6 : vector<32x1xf32> to vector<32x64xf32>
    %8 = arith.subf %4, %7 : vector<32x64xf32>
    %9 = math.exp %8 : vector<32x64xf32>
    %cst_6 = arith.constant dense<0.000000e+00> : vector<32xf32>
    %10 = vector.multi_reduction <add>, %9, %cst_6 [1] : vector<32x64xf32> to vector<32xf32>
    %11 = vector.shape_cast %10 : vector<32xf32> to vector<32x1xf32>
    %12 = tpu.reciprocal %11 {approx = true} : vector<32x1xf32> -> vector<32x1xf32>
    %13 = vector.broadcast %12 : vector<32x1xf32> to vector<32x64xf32>
    %14 = arith.mulf %9, %13 : vector<32x64xf32>
    %15 = arith.truncf %14 : vector<32x64xf32> to vector<32x64xbf16>
    %c0_7 = arith.constant 0 : index
    %c0_8 = arith.constant 0 : index
    %c0_9 = arith.constant 0 : index
    %16 = vector.load %arg3[%c0_7, %c0_8, %c0_9] : memref<1x64x32xbf16, #tpu.memory_space<vmem>>, vector<1x64x32xbf16>
    %17 = vector.shape_cast %16 : vector<1x64x32xbf16> to vector<64x32xbf16>
    %cst_10 = arith.constant dense<0.000000e+00> : vector<32x32xf32>
    %18 = tpu.matmul %15, %17, %cst_10 {dimension_numbers = #tpu.dot_dimension_numbers<[1], [0], [0], [1], [0, 0, 1, 1], [], []>} : vector<32x64xbf16>, vector<64x32xbf16>, vector<32x32xf32> -> vector<32x32xf32>
    %19 = arith.truncf %18 : vector<32x32xf32> to vector<32x32xbf16>
    %c0_11 = arith.constant 0 : index
    %c0_12 = arith.constant 0 : index
    %c0_13 = arith.constant 0 : index
    %20 = vector.load %arg5[%c0_11, %c0_12, %c0_13] : memref<1x32x32xbf16, #tpu.memory_space<vmem>>, vector<1x32x32xbf16>
    %21 = vector.shape_cast %20 : vector<1x32x32xbf16> to vector<32x32xbf16>
    %c0_14 = arith.constant 0 : index
    %c0_15 = arith.constant 0 : index
    %22 = vector.load %arg7[%c0_14, %c0_15] : memref<32x128xbf16, #tpu.memory_space<vmem>>, vector<32x128xbf16>
    %cst_16 = arith.constant dense<0.000000e+00> : vector<32x128xf32>
    %23 = tpu.matmul %21, %22, %cst_16 {dimension_numbers = #tpu.dot_dimension_numbers<[1], [0], [0], [1], [0, 0, 1, 1], [], []>} : vector<32x32xbf16>, vector<32x128xbf16>, vector<32x128xf32> -> vector<32x128xf32>
    %c0_17 = arith.constant 0 : index
    %c0_18 = arith.constant 0 : index
    %24 = vector.load %arg8[%c0_17, %c0_18] : memref<32x128xbf16, #tpu.memory_space<vmem>>, vector<32x128xbf16>
    %cst_19 = arith.constant dense<0.000000e+00> : vector<32x128xf32>
    %25 = tpu.matmul %19, %24, %cst_19 {dimension_numbers = #tpu.dot_dimension_numbers<[1], [0], [0], [1], [0, 0, 1, 1], [], []>} : vector<32x32xbf16>, vector<32x128xbf16>, vector<32x128xf32> -> vector<32x128xf32>
    %26 = arith.addf %23, %25 : vector<32x128xf32>
    %c0_20 = arith.constant 0 : index
    %c0_21 = arith.constant 0 : index
    %27 = vector.load %arg9[%c0_20, %c0_21] : memref<1x128xf32, #tpu.memory_space<vmem>>, vector<1x128xf32>
    %28 = vector.broadcast %27 : vector<1x128xf32> to vector<32x128xf32>
    %29 = arith.addf %26, %28 : vector<32x128xf32>
    %cst_22 = arith.constant 0.000000e+00 : f32
    %30 = vector.broadcast %cst_22 : f32 to vector<32x128xf32>
    %31 = arith.maximumf %29, %30 : vector<32x128xf32>
    %32 = arith.truncf %31 : vector<32x128xf32> to vector<32x128xbf16>
    %c0_23 = arith.constant 0 : index
    %c0_24 = arith.constant 0 : index
    %33 = vector.load %arg10[%c0_23, %c0_24] : memref<128x128xbf16, #tpu.memory_space<vmem>>, vector<128x128xbf16>
    %cst_25 = arith.constant dense<0.000000e+00> : vector<32x128xf32>
    %34 = tpu.matmul %32, %33, %cst_25 {dimension_numbers = #tpu.dot_dimension_numbers<[1], [0], [0], [1], [0, 0, 1, 1], [], []>} : vector<32x128xbf16>, vector<128x128xbf16>, vector<32x128xf32> -> vector<32x128xf32>
    %c0_26 = arith.constant 0 : index
    %c0_27 = arith.constant 0 : index
    %35 = vector.load %arg11[%c0_26, %c0_27] : memref<1x128xf32, #tpu.memory_space<vmem>>, vector<1x128xf32>
    %36 = vector.broadcast %35 : vector<1x128xf32> to vector<32x128xf32>
    %37 = arith.addf %34, %36 : vector<32x128xf32>
    %cst_28 = arith.constant 0.000000e+00 : f32
    %38 = vector.broadcast %cst_28 : f32 to vector<32x128xf32>
    %39 = arith.maximumf %37, %38 : vector<32x128xf32>
    %40 = arith.truncf %39 : vector<32x128xf32> to vector<32x128xbf16>
    %c0_29 = arith.constant 0 : index
    %c0_30 = arith.constant 0 : index
    %41 = vector.load %arg12[%c0_29, %c0_30] : memref<128x128xbf16, #tpu.memory_space<vmem>>, vector<128x128xbf16>
    %cst_31 = arith.constant dense<0.000000e+00> : vector<32x128xf32>
    %42 = tpu.matmul %40, %41, %cst_31 {dimension_numbers = #tpu.dot_dimension_numbers<[1], [0], [0], [1], [0, 0, 1, 1], [], []>} : vector<32x128xbf16>, vector<128x128xbf16>, vector<32x128xf32> -> vector<32x128xf32>
    %c0_32 = arith.constant 0 : index
    %c0_33 = arith.constant 0 : index
    %43 = vector.load %arg13[%c0_32, %c0_33] : memref<1x128xf32, #tpu.memory_space<vmem>>, vector<1x128xf32>
    %44 = vector.broadcast %43 : vector<1x128xf32> to vector<32x128xf32>
    %45 = arith.addf %42, %44 : vector<32x128xf32>
    %46 = tpu.iota {dimensions = array<i32: 1>} : vector<32x128xi32>
    %c15_i32 = arith.constant 15 : i32
    %47 = vector.broadcast %c15_i32 : i32 to vector<32x128xi32>
    %48 = arith.cmpi sge, %46, %47 : vector<32x128xi32>
    %c24_i32 = arith.constant 24 : i32
    %49 = vector.broadcast %c24_i32 : i32 to vector<32x128xi32>
    %50 = arith.cmpi slt, %46, %49 : vector<32x128xi32>
    %51 = arith.andi %48, %50 : vector<32x128xi1>
    %cst_34 = arith.constant -1.000000e+30 : f32
    %52 = vector.broadcast %cst_34 : f32 to vector<32x128xf32>
    %53 = arith.select %51, %45, %52 : vector<32x128xi1>, vector<32x128xf32>
    %cst_35 = arith.constant dense<0xFF800000> : vector<32xf32>
    %54 = vector.multi_reduction <maximumf>, %53, %cst_35 [1] : vector<32x128xf32> to vector<32xf32>
    %55 = vector.shape_cast %54 : vector<32xf32> to vector<32x1xf32>
    %56 = vector.broadcast %55 : vector<32x1xf32> to vector<32x128xf32>
    %57 = arith.subf %53, %56 : vector<32x128xf32>
    %58 = math.exp %57 : vector<32x128xf32>
    %cst_36 = arith.constant dense<0.000000e+00> : vector<32xf32>
    %59 = vector.multi_reduction <add>, %58, %cst_36 [1] : vector<32x128xf32> to vector<32xf32>
    %60 = vector.shape_cast %59 : vector<32xf32> to vector<32x1xf32>
    %61 = vector.broadcast %60 : vector<32x1xf32> to vector<32x128xf32>
    %62 = arith.divf %58, %61 : vector<32x128xf32>
    %63 = arith.select %51, %62, %45 : vector<32x128xi1>, vector<32x128xf32>
    %c0_37 = arith.constant 0 : index
    %c0_38 = arith.constant 0 : index
    %c0_39 = arith.constant 0 : index
    %64 = vector.load %arg6[%c0_37, %c0_38, %c0_39] : memref<1x32x128xf32, #tpu.memory_space<vmem>>, vector<1x32x128xf32>
    %65 = vector.shape_cast %64 : vector<1x32x128xf32> to vector<32x128xf32>
    %66 = arith.addf %63, %65 : vector<32x128xf32>
    %c0_40 = arith.constant 0 : index
    %c0_41 = arith.constant 0 : index
    %c0_42 = arith.constant 0 : index
    %67 = vector.load %arg14[%c0_40, %c0_41, %c0_42] : memref<1x32x128xf32, #tpu.memory_space<vmem>>, vector<1x32x128xf32>
    %68 = vector.shape_cast %67 : vector<1x32x128xf32> to vector<32x128xf32>
    %69 = vector.shape_cast %66 : vector<32x128xf32> to vector<1x32x128xf32>
    tpu.vector_store %arg14[%c0_40, %c0_41, %c0_42], %69 {strides = array<i32>} : memref<1x32x128xf32, #tpu.memory_space<vmem>>, vector<1x32x128xf32>,
    return
  }
  func.func @transform_0(%arg0: i32, %arg1: i32) -> (i32, i32, i32) {
    %c0_i32 = arith.constant 0 : i32
    %c0_i32_0 = arith.constant 0 : i32
    %c0_i32_1 = arith.constant 0 : i32
    return %arg0, %c0_i32, %c0_i32_0 : i32, i32, i32
  }
  func.func @transform_1(%arg0: i32, %arg1: i32) -> (i32, i32, i32) {
    %c0_i32 = arith.constant 0 : i32
    %c0_i32_0 = arith.constant 0 : i32
    %c0_i32_1 = arith.constant 0 : i32
    return %arg0, %c0_i32, %c0_i32_0 : i32, i32, i32
  }
  func.func @transform_2(%arg0: i32, %arg1: i32) -> (i32, i32, i32) {
    %c0_i32 = arith.constant 0 : i32
    %c0_i32_0 = arith.constant 0 : i32
    return %arg0, %arg1, %c0_i32 : i32, i32, i32
  }
  func.func @transform_3(%arg0: i32, %arg1: i32) -> (i32, i32, i32) {
    %c0_i32 = arith.constant 0 : i32
    %c0_i32_0 = arith.constant 0 : i32
    return %arg0, %arg1, %c0_i32 : i32, i32, i32
  }
  func.func @transform_4(%arg0: i32, %arg1: i32) -> (i32, i32, i32) {
    %c0_i32 = arith.constant 0 : i32
    %c0_i32_0 = arith.constant 0 : i32
    return %arg0, %arg1, %c0_i32 : i32, i32, i32
  }
  func.func @transform_5(%arg0: i32, %arg1: i32) -> (i32, i32) {
    %c0_i32 = arith.constant 0 : i32
    %c0_i32_0 = arith.constant 0 : i32
    %c0_i32_1 = arith.constant 0 : i32
    return %c0_i32, %c0_i32_0 : i32, i32
  }
  func.func @transform_6(%arg0: i32, %arg1: i32) -> (i32, i32) {
    %c0_i32 = arith.constant 0 : i32
    %c0_i32_0 = arith.constant 0 : i32
    %c0_i32_1 = arith.constant 0 : i32
    return %c0_i32, %c0_i32_0 : i32, i32
  }
  func.func @transform_7(%arg0: i32, %arg1: i32) -> (i32, i32) {
    %c0_i32 = arith.constant 0 : i32
    %c0_i32_0 = arith.constant 0 : i32
    %c0_i32_1 = arith.constant 0 : i32
    return %c0_i32, %c0_i32_0 : i32, i32
  }
  func.func @transform_8(%arg0: i32, %arg1: i32) -> (i32, i32) {
    %c0_i32 = arith.constant 0 : i32
    %c0_i32_0 = arith.constant 0 : i32
    %c0_i32_1 = arith.constant 0 : i32
    return %c0_i32, %c0_i32_0 : i32, i32
  }
  func.func @transform_9(%arg0: i32, %arg1: i32) -> (i32, i32) {
    %c0_i32 = arith.constant 0 : i32
    %c0_i32_0 = arith.constant 0 : i32
    %c0_i32_1 = arith.constant 0 : i32
    return %c0_i32, %c0_i32_0 : i32, i32
  }
  func.func @transform_10(%arg0: i32, %arg1: i32) -> (i32, i32) {
    %c0_i32 = arith.constant 0 : i32
    %c0_i32_0 = arith.constant 0 : i32
    %c0_i32_1 = arith.constant 0 : i32
    return %c0_i32, %c0_i32_0 : i32, i32
  }
  func.func @transform_11(%arg0: i32, %arg1: i32) -> (i32, i32) {
    %c0_i32 = arith.constant 0 : i32
    %c0_i32_0 = arith.constant 0 : i32
    %c0_i32_1 = arith.constant 0 : i32
    return %c0_i32, %c0_i32_0 : i32, i32
  }
  func.func @transform_12(%arg0: i32, %arg1: i32) -> (i32, i32, i32) {
    %c0_i32 = arith.constant 0 : i32
    %c0_i32_0 = arith.constant 0 : i32
    return %arg0, %arg1, %c0_i32 : i32, i32, i32
  }
}

</mosaic_0001>

<llo_original>
// kernel: tpu_custom_call.1
$region0: #{tpu_custom_call.1}
  #allocation0 [shape = 'u32[]', space=smem, size = 0x4, offset = 0x4, fixed_abs, tag = 'smem constant byte address 0x4 - core index']
  #allocation1 [shape = 'u32[144,128]{1,0:T(1,128)}', space=vmem, size = 0x12000, scoped, tag = 'internal scratch']
  %s0 = inlined_call_operand.vmem [shape: f32[2,64,4], index: 0, kind: input, shape index: {}]
  %s1 = inlined_call_operand.vmem [shape: bf16[2,64,32], index: 1, kind: input, shape index: {}]
  %s2 = inlined_call_operand.vmem [shape: f32[2,32,4], index: 2, kind: input, shape index: {}]
  %s3 = inlined_call_operand.vmem [shape: bf16[2,32,32], index: 3, kind: input, shape index: {}]
  %s4 = inlined_call_operand.vmem [shape: f32[2,32,128], index: 4, kind: input, shape index: {}]
  %s5 = inlined_call_operand.vmem [shape: bf16[32,128], index: 5, kind: input, shape index: {}]
  %s6 = inlined_call_operand.vmem [shape: bf16[32,128], index: 6, kind: input, shape index: {}]
  %s7 = inlined_call_operand.vmem [shape: f32[1,128], index: 7, kind: input, shape index: {}]
  %s8 = inlined_call_operand.vmem [shape: bf16[128,128], index: 8, kind: input, shape index: {}]
  %s9 = inlined_call_operand.vmem [shape: f32[1,128], index: 9, kind: input, shape index: {}]
  %s10 = inlined_call_operand.vmem [shape: bf16[128,128], index: 10, kind: input, shape index: {}]
  %s11 = inlined_call_operand.vmem [shape: f32[1,128], index: 11, kind: input, shape index: {}]
  %s12 = inlined_call_operand.hbm [shape: f32[2,32,128], index: 12, kind: output, shape index: {}]
  %s13 = sld [smem:[#allocation0]]
  $region81: #{tpu_custom_call.1} parent=0
    _
  %s15 = ssub.s32 1, %s13
  %s16 = scalar_select 0, %s15, %s13
  $region1: #{tpu_custom_call.1} parent=0
    #allocation2 [shape = 'u8[32768]{0}', space=vmem, size = 0x8000, scoped, tag = 'output window, operand 0']
    #allocation3 [shape = 's32[2]{0}', space=sflag, size = 0x8, scoped, tag = 'scoped memory for tpu_custom_call.1']
    %17 = vsyncpa [#allocation3], 0
    %s18 = scalar_lea.sflag [#allocation3], 1
    %19 = vsyncpa %s18, 0
    loop: start=0, step=1, limit=4
    $region2: #{tpu_custom_call.1} parent=1 // loop_pre_header
      _
    $region3: #{tpu_custom_call.1} parent=1 // loop_header
      %s21 = sphi 0, %s25
      %p22 = scmp.ge.s32.totalorder %s21, 4
      %s28 = sphi 0, %s40
      %s29 = sphi 0, %s36
      %s30 = sphi 0, %s28
      %s31 = sphi 0, %s29
      %s32 = sphi 0, %s30
      %s33 = sphi 0, %s31
      %s43 = sphi 0, %s45
      %s46 = sphi 0, %s43
      %s47 = sphi 0, %s46
      %s63 = sphi 0, %s47
      %s69 = sphi 0, %s71
      %s72 = sphi 0, %s69
      %s73 = sphi 0, %s72
      %s89 = sphi 0, %s73
      %s97 = sphi 0, %s99
      %s100 = sphi 0, %s97
      %s101 = sphi 0, %s100
      %s117 = sphi 0, %s101
      %s125 = sphi 0, %s127
      %s128 = sphi 0, %s125
      %s129 = sphi 0, %s128
      %s145 = sphi 0, %s129
      %s153 = sphi 0, %s155
      %s156 = sphi 0, %s153
      %s157 = sphi 0, %s156
      %s173 = sphi 0, %s157
      %s177 = sphi 0, %s177
      %s179 = sphi 0, %s177
      %s180 = sphi 0, %s179
      %s194 = sphi 0, %s180
      %s198 = sphi 0, %s198
      %s200 = sphi 0, %s198
      %s201 = sphi 0, %s200
      %s215 = sphi 0, %s201
      %s219 = sphi 0, %s219
      %s221 = sphi 0, %s219
      %s222 = sphi 0, %s221
      %s236 = sphi 0, %s222
      %s240 = sphi 0, %s240
      %s242 = sphi 0, %s240
      %s243 = sphi 0, %s242
      %s257 = sphi 0, %s243
      %s261 = sphi 0, %s261
      %s263 = sphi 0, %s261
      %s264 = sphi 0, %s263
      %s278 = sphi 0, %s264
      %s282 = sphi 0, %s282
      %s284 = sphi 0, %s282
      %s285 = sphi 0, %s284
      %s299 = sphi 0, %s285
      %s303 = sphi 0, %s303
      %s305 = sphi 0, %s303
      %s306 = sphi 0, %s305
      %s320 = sphi 0, %s306
      %s328 = sphi 0, %s330
      %s331 = sphi 0, %s328
      %s332 = sphi 0, %s331
      %s348 = sphi 0, %s332
    $region4: #{tpu_custom_call.1} parent=1 // loop_header_branch
      %24 = sbr.rel (%p22) target = $region8
    $region5: #{tpu_custom_call.1} parent=1 // loop_body
      %s26 = ssub.s32 %s21, 1
      %s27 = ssub.s32 %s21, 2
      %s34 = sadd.s32 1, %s29
      %p35 = scmp.ge.s32.totalorder %s34, 1
      %s36 = scalar_select %p35, 0, %s34
      %s37 = sadd.s32 1, %s28
      %s38 = scalar_select %p35, %s37, %s28
      %p39 = scmp.ge.s32.totalorder %s38, 2
      %s40 = scalar_select %p39, 0, %s38
      %s41 = ssub.s32 %s28, %s40
      %p42 = scmp.eq.s32.totalorder %s41, 0
      %s44 = sadd.s32 %s43, 1
      %s45 = scalar_select %p42, %s43, %s44
      %p48 = pneg %p42
      %p49 = scmp.eq.s32.totalorder %s21, 1
      %p50 = por %p48, %p49
      %p51 = scmp.ne.s32.totalorder %s43, %s46
      %p52 = scmp.eq.s32.totalorder %s21, 0
      %p53 = por %p51, %p52
      %p54 = scmp.ne.s32.totalorder %s43, %s46
      %p55 = scmp.eq.s32.totalorder %s26, 1
      %p56 = por %p54, %p55
      %p57 = scmp.ne.s32.totalorder %s46, %s47
      %p58 = scmp.eq.s32.totalorder %s26, 0
      %p59 = por %p57, %p58
      %p60 = scmp.ne.s32.totalorder %s46, %s47
      %p61 = scmp.eq.s32.totalorder %s27, 1
      %p62 = por %p60, %p61
      %p64 = scmp.ne.s32.totalorder %s47, %s63
      %p65 = scmp.eq.s32.totalorder %s27, 0
      %p66 = por %p64, %p65
      %s67 = ssub.s32 %s28, %s40
      %p68 = scmp.eq.s32.totalorder %s67, 0
      %s70 = sadd.s32 %s69, 1
      %s71 = scalar_select %p68, %s69, %s70
      %p74 = pneg %p68
      %p75 = scmp.eq.s32.totalorder %s21, 1
      %p76 = por %p74, %p75
      %p77 = scmp.ne.s32.totalorder %s69, %s72
      %p78 = scmp.eq.s32.totalorder %s21, 0
      %p79 = por %p77, %p78
      %p80 = scmp.ne.s32.totalorder %s69, %s72
      %p81 = scmp.eq.s32.totalorder %s26, 1
      %p82 = por %p80, %p81
      %p83 = scmp.ne.s32.totalorder %s72, %s73
      %p84 = scmp.eq.s32.totalorder %s26, 0
      %p85 = por %p83, %p84
      %p86 = scmp.ne.s32.totalorder %s72, %s73
      %p87 = scmp.eq.s32.totalorder %s27, 1
      %p88 = por %p86, %p87
      %p90 = scmp.ne.s32.totalorder %s73, %s89
      %p91 = scmp.eq.s32.totalorder %s27, 0
      %p92 = por %p90, %p91
      %s93 = ssub.s32 %s28, %s40
      %s94 = ssub.s32 %s29, %s36
      %s95 = sor.u32 %s93, %s94
      %p96 = scmp.eq.s32.totalorder %s95, 0
      %s98 = sadd.s32 %s97, 1
      %s99 = scalar_select %p96, %s97, %s98
      %p102 = pneg %p96
      %p103 = scmp.eq.s32.totalorder %s21, 1
      %p104 = por %p102, %p103
      %p105 = scmp.ne.s32.totalorder %s97, %s100
      %p106 = scmp.eq.s32.totalorder %s21, 0
      %p107 = por %p105, %p106
      %p108 = scmp.ne.s32.totalorder %s97, %s100
      %p109 = scmp.eq.s32.totalorder %s26, 1
      %p110 = por %p108, %p109
      %p111 = scmp.ne.s32.totalorder %s100, %s101
      %p112 = scmp.eq.s32.totalorder %s26, 0
      %p113 = por %p111, %p112
      %p114 = scmp.ne.s32.totalorder %s100, %s101
      %p115 = scmp.eq.s32.totalorder %s27, 1
      %p116 = por %p114, %p115
      %p118 = scmp.ne.s32.totalorder %s101, %s117
      %p119 = scmp.eq.s32.totalorder %s27, 0
      %p120 = por %p118, %p119
      %s121 = ssub.s32 %s28, %s40
      %s122 = ssub.s32 %s29, %s36
      %s123 = sor.u32 %s121, %s122
      %p124 = scmp.eq.s32.totalorder %s123, 0
      %s126 = sadd.s32 %s125, 1
      %s127 = scalar_select %p124, %s125, %s126
      %p130 = pneg %p124
      %p131 = scmp.eq.s32.totalorder %s21, 1
      %p132 = por %p130, %p131
      %p133 = scmp.ne.s32.totalorder %s125, %s128
      %p134 = scmp.eq.s32.totalorder %s21, 0
      %p135 = por %p133, %p134
      %p136 = scmp.ne.s32.totalorder %s125, %s128
      %p137 = scmp.eq.s32.totalorder %s26, 1
      %p138 = por %p136, %p137
      %p139 = scmp.ne.s32.totalorder %s128, %s129
      %p140 = scmp.eq.s32.totalorder %s26, 0
      %p141 = por %p139, %p140
      %p142 = scmp.ne.s32.totalorder %s128, %s129
      %p143 = scmp.eq.s32.totalorder %s27, 1
      %p144 = por %p142, %p143
      %p146 = scmp.ne.s32.totalorder %s129, %s145
      %p147 = scmp.eq.s32.totalorder %s27, 0
      %p148 = por %p146, %p147
      %s149 = ssub.s32 %s28, %s40
      %s150 = ssub.s32 %s29, %s36
      %s151 = sor.u32 %s149, %s150
      %p152 = scmp.eq.s32.totalorder %s151, 0
      %s154 = sadd.s32 %s153, 1
      %s155 = scalar_select %p152, %s153, %s154
      %p158 = pneg %p152
      %p159 = scmp.eq.s32.totalorder %s21, 1
      %p160 = por %p158, %p159
      %p161 = scmp.ne.s32.totalorder %s153, %s156
      %p162 = scmp.eq.s32.totalorder %s21, 0
      %p163 = por %p161, %p162
      %p164 = scmp.ne.s32.totalorder %s153, %s156
      %p165 = scmp.eq.s32.totalorder %s26, 1
      %p166 = por %p164, %p165
      %p167 = scmp.ne.s32.totalorder %s156, %s157
      %p168 = scmp.eq.s32.totalorder %s26, 0
      %p169 = por %p167, %p168
      %p170 = scmp.ne.s32.totalorder %s156, %s157
      %p171 = scmp.eq.s32.totalorder %s27, 1
      %p172 = por %p170, %p171
      %p174 = scmp.ne.s32.totalorder %s157, %s173
      %p175 = scmp.eq.s32.totalorder %s27, 0
      %p176 = por %p174, %p175
      %s178 = sadd.s32 %s177, 1
      %p181 = scmp.eq.s32.totalorder %s21, 1
      %p182 = scmp.ne.s32.totalorder %s177, %s179
      %p183 = scmp.eq.s32.totalorder %s21, 0
      %p184 = por %p182, %p183
      %p185 = scmp.ne.s32.totalorder %s177, %s179
      %p186 = scmp.eq.s32.totalorder %s26, 1
      %p187 = por %p185, %p186
      %p188 = scmp.ne.s32.totalorder %s179, %s180
      %p189 = scmp.eq.s32.totalorder %s26, 0
      %p190 = por %p188, %p189
      %p191 = scmp.ne.s32.totalorder %s179, %s180
      %p192 = scmp.eq.s32.totalorder %s27, 1
      %p193 = por %p191, %p192
      %p195 = scmp.ne.s32.totalorder %s180, %s194
      %p196 = scmp.eq.s32.totalorder %s27, 0
      %p197 = por %p195, %p196
      %s199 = sadd.s32 %s198, 1
      %p202 = scmp.eq.s32.totalorder %s21, 1
      %p203 = scmp.ne.s32.totalorder %s198, %s200
      %p204 = scmp.eq.s32.totalorder %s21, 0
      %p205 = por %p203, %p204
      %p206 = scmp.ne.s32.totalorder %s198, %s200
      %p207 = scmp.eq.s32.totalorder %s26, 1
      %p208 = por %p206, %p207
      %p209 = scmp.ne.s32.totalorder %s200, %s201
      %p210 = scmp.eq.s32.totalorder %s26, 0
      %p211 = por %p209, %p210
      %p212 = scmp.ne.s32.totalorder %s200, %s201
      %p213 = scmp.eq.s32.totalorder %s27, 1
      %p214 = por %p212, %p213
      %p216 = scmp.ne.s32.totalorder %s201, %s215
      %p217 = scmp.eq.s32.totalorder %s27, 0
      %p218 = por %p216, %p217
      %s220 = sadd.s32 %s219, 1
      %p223 = scmp.eq.s32.totalorder %s21, 1
      %p224 = scmp.ne.s32.totalorder %s219, %s221
      %p225 = scmp.eq.s32.totalorder %s21, 0
      %p226 = por %p224, %p225
      %p227 = scmp.ne.s32.totalorder %s219, %s221
      %p228 = scmp.eq.s32.totalorder %s26, 1
      %p229 = por %p227, %p228
      %p230 = scmp.ne.s32.totalorder %s221, %s222
      %p231 = scmp.eq.s32.totalorder %s26, 0
      %p232 = por %p230, %p231
      %p233 = scmp.ne.s32.totalorder %s221, %s222
      %p234 = scmp.eq.s32.totalorder %s27, 1
      %p235 = por %p233, %p234
      %p237 = scmp.ne.s32.totalorder %s222, %s236
      %p238 = scmp.eq.s32.totalorder %s27, 0
      %p239 = por %p237, %p238
      %s241 = sadd.s32 %s240, 1
      %p244 = scmp.eq.s32.totalorder %s21, 1
      %p245 = scmp.ne.s32.totalorder %s240, %s242
      %p246 = scmp.eq.s32.totalorder %s21, 0
      %p247 = por %p245, %p246
      %p248 = scmp.ne.s32.totalorder %s240, %s242
      %p249 = scmp.eq.s32.totalorder %s26, 1
      %p250 = por %p248, %p249
      %p251 = scmp.ne.s32.totalorder %s242, %s243
      %p252 = scmp.eq.s32.totalorder %s26, 0
      %p253 = por %p251, %p252
      %p254 = scmp.ne.s32.totalorder %s242, %s243
      %p255 = scmp.eq.s32.totalorder %s27, 1
      %p256 = por %p254, %p255
      %p258 = scmp.ne.s32.totalorder %s243, %s257
      %p259 = scmp.eq.s32.totalorder %s27, 0
      %p260 = por %p258, %p259
      %s262 = sadd.s32 %s261, 1
      %p265 = scmp.eq.s32.totalorder %s21, 1
      %p266 = scmp.ne.s32.totalorder %s261, %s263
      %p267 = scmp.eq.s32.totalorder %s21, 0
      %p268 = por %p266, %p267
      %p269 = scmp.ne.s32.totalorder %s261, %s263
      %p270 = scmp.eq.s32.totalorder %s26, 1
      %p271 = por %p269, %p270
      %p272 = scmp.ne.s32.totalorder %s263, %s264
      %p273 = scmp.eq.s32.totalorder %s26, 0
      %p274 = por %p272, %p273
      %p275 = scmp.ne.s32.totalorder %s263, %s264
      %p276 = scmp.eq.s32.totalorder %s27, 1
      %p277 = por %p275, %p276
      %p279 = scmp.ne.s32.totalorder %s264, %s278
      %p280 = scmp.eq.s32.totalorder %s27, 0
      %p281 = por %p279, %p280
      %s283 = sadd.s32 %s282, 1
      %p286 = scmp.eq.s32.totalorder %s21, 1
      %p287 = scmp.ne.s32.totalorder %s282, %s284
      %p288 = scmp.eq.s32.totalorder %s21, 0
      %p289 = por %p287, %p288
      %p290 = scmp.ne.s32.totalorder %s282, %s284
      %p291 = scmp.eq.s32.totalorder %s26, 1
      %p292 = por %p290, %p291
      %p293 = scmp.ne.s32.totalorder %s284, %s285
      %p294 = scmp.eq.s32.totalorder %s26, 0
      %p295 = por %p293, %p294
      %p296 = scmp.ne.s32.totalorder %s284, %s285
      %p297 = scmp.eq.s32.totalorder %s27, 1
      %p298 = por %p296, %p297
      %p300 = scmp.ne.s32.totalorder %s285, %s299
      %p301 = scmp.eq.s32.totalorder %s27, 0
      %p302 = por %p300, %p301
      %s304 = sadd.s32 %s303, 1
      %p307 = scmp.eq.s32.totalorder %s21, 1
      %p308 = scmp.ne.s32.totalorder %s303, %s305
      %p309 = scmp.eq.s32.totalorder %s21, 0
      %p310 = por %p308, %p309
      %p311 = scmp.ne.s32.totalorder %s303, %s305
      %p312 = scmp.eq.s32.totalorder %s26, 1
      %p313 = por %p311, %p312
      %p314 = scmp.ne.s32.totalorder %s305, %s306
      %p315 = scmp.eq.s32.totalorder %s26, 0
      %p316 = por %p314, %p315
      %p317 = scmp.ne.s32.totalorder %s305, %s306
      %p318 = scmp.eq.s32.totalorder %s27, 1
      %p319 = por %p317, %p318
      %p321 = scmp.ne.s32.totalorder %s306, %s320
      %p322 = scmp.eq.s32.totalorder %s27, 0
      %p323 = por %p321, %p322
      %s324 = ssub.s32 %s28, %s40
      %s325 = ssub.s32 %s29, %s36
      %s326 = sor.u32 %s324, %s325
      %p327 = scmp.eq.s32.totalorder %s326, 0
      %s329 = sadd.s32 %s328, 1
      %s330 = scalar_select %p327, %s328, %s329
      %p333 = pneg %p327
      %p334 = scmp.eq.s32.totalorder %s21, 1
      %p335 = por %p333, %p334
      %p336 = scmp.ne.s32.totalorder %s328, %s331
      %p337 = scmp.eq.s32.totalorder %s21, 0
      %p338 = por %p336, %p337
      %p339 = scmp.ne.s32.totalorder %s328, %s331
      %p340 = scmp.eq.s32.totalorder %s26, 1
      %p341 = por %p339, %p340
      %p342 = scmp.ne.s32.totalorder %s331, %s332
      %p343 = scmp.eq.s32.totalorder %s26, 0
      %p344 = por %p342, %p343
      %p345 = scmp.ne.s32.totalorder %s331, %s332
      %p346 = scmp.eq.s32.totalorder %s27, 1
      %p347 = por %p345, %p346
      %p349 = scmp.ne.s32.totalorder %s332, %s348
      %p350 = scmp.eq.s32.totalorder %s27, 0
      %p351 = por %p349, %p350
      %p352 = scmp.le.s32.totalorder 1, %s21
      %p353 = scmp.lt.s32.totalorder %s21, 3
      %p354 = pnand %p352, %p353
      %p355 = pneg %p354
      // Predicated region
      $region9: #{tpu_custom_call.1} parent=5 // pred_check
        _
      $region10: #{tpu_custom_call.1} parent=5 // pred_check_branch
        %357 = sbr.rel (%p354) target = $region12
      $region11: #{tpu_custom_call.1} parent=5 // pred_region
        %s358 = ssub.s32 %s21, 1
        // Predicated region
        $region13: #{tpu_custom_call.1} parent=11 // pred_check
          %p359 = pneg %p190
        $region14: #{tpu_custom_call.1} parent=11 // pred_check_branch
          %361 = sbr.rel (%p359) target = $region16
        $region15: #{tpu_custom_call.1} parent=11 // pred_region
          _
        $region16: #{tpu_custom_call.1} parent=11 // pred_fallthru
          _
        // Predicated region
        $region17: #{tpu_custom_call.1} parent=11 // pred_check
          %p362 = pneg %p211
        $region18: #{tpu_custom_call.1} parent=11 // pred_check_branch
          %364 = sbr.rel (%p362) target = $region20
        $region19: #{tpu_custom_call.1} parent=11 // pred_region
          _
        $region20: #{tpu_custom_call.1} parent=11 // pred_fallthru
          _
        // Predicated region
        $region21: #{tpu_custom_call.1} parent=11 // pred_check
          %p365 = pneg %p232
        $region22: #{tpu_custom_call.1} parent=11 // pred_check_branch
          %367 = sbr.rel (%p365) target = $region24
        $region23: #{tpu_custom_call.1} parent=11 // pred_region
          _
        $region24: #{tpu_custom_call.1} parent=11 // pred_fallthru
          _
        // Predicated region
        $region25: #{tpu_custom_call.1} parent=11 // pred_check
          %p368 = pneg %p253
        $region26: #{tpu_custom_call.1} parent=11 // pred_check_branch
          %370 = sbr.rel (%p368) target = $region28
        $region27: #{tpu_custom_call.1} parent=11 // pred_region
          _
        $region28: #{tpu_custom_call.1} parent=11 // pred_fallthru
          _
        // Predicated region
        $region29: #{tpu_custom_call.1} parent=11 // pred_check
          %p371 = pneg %p274
        $region30: #{tpu_custom_call.1} parent=11 // pred_check_branch
          %373 = sbr.rel (%p371) target = $region32
        $region31: #{tpu_custom_call.1} parent=11 // pred_region
          _
        $region32: #{tpu_custom_call.1} parent=11 // pred_fallthru
          _
        // Predicated region
        $region33: #{tpu_custom_call.1} parent=11 // pred_check
          %p374 = pneg %p295
        $region34: #{tpu_custom_call.1} parent=11 // pred_check_branch
          %376 = sbr.rel (%p374) target = $region36
        $region35: #{tpu_custom_call.1} parent=11 // pred_region
          _
        $region36: #{tpu_custom_call.1} parent=11 // pred_fallthru
          _
        // Predicated region
        $region37: #{tpu_custom_call.1} parent=11 // pred_check
          %p377 = pneg %p316
        $region38: #{tpu_custom_call.1} parent=11 // pred_check_branch
          %379 = sbr.rel (%p377) target = $region40
        $region39: #{tpu_custom_call.1} parent=11 // pred_region
          _
        $region40: #{tpu_custom_call.1} parent=11 // pred_fallthru
          _
      $region12: #{tpu_custom_call.1} parent=5 // pred_fallthru
        _
      %p380 = scmp.lt.s32.totalorder %s21, 2
      // Predicated region
      $region41: #{tpu_custom_call.1} parent=5 // pred_check
        %p381 = pneg %p380
      $region42: #{tpu_custom_call.1} parent=5 // pred_check_branch
        %383 = sbr.rel (%p381) target = $region44
      $region43: #{tpu_custom_call.1} parent=5 // pred_region
        // Predicated region
        $region45: #{tpu_custom_call.1} parent=43 // pred_check
          %p384 = pneg %p53
        $region46: #{tpu_custom_call.1} parent=43 // pred_check_branch
          %386 = sbr.rel (%p384) target = $region48
        $region47: #{tpu_custom_call.1} parent=43 // pred_region
          %p387 = scmp.lt.s32.totalorder %s28, 1
          %s388 = scalar_select %p387, %s28, 1
          %s389 = smul.addr %s388, 8
          %s390 = smul.addr %s389, 8
          %s391 = scalar_lea.vmem %s0, %s390
        $region48: #{tpu_custom_call.1} parent=43 // pred_fallthru
          _
        // Predicated region
        $region49: #{tpu_custom_call.1} parent=43 // pred_check
          %p392 = pneg %p79
        $region50: #{tpu_custom_call.1} parent=43 // pred_check_branch
          %394 = sbr.rel (%p392) target = $region52
        $region51: #{tpu_custom_call.1} parent=43 // pred_region
          %p395 = scmp.lt.s32.totalorder %s28, 1
          %s396 = scalar_select %p395, %s28, 1
          %s397 = smul.addr %s396, 8
          %s398 = smul.addr %s397, 4
          %s399 = scalar_lea.vmem %s1, %s398
        $region52: #{tpu_custom_call.1} parent=43 // pred_fallthru
          _
        // Predicated region
        $region53: #{tpu_custom_call.1} parent=43 // pred_check
          %p400 = pneg %p107
        $region54: #{tpu_custom_call.1} parent=43 // pred_check_branch
          %402 = sbr.rel (%p400) target = $region56
        $region55: #{tpu_custom_call.1} parent=43 // pred_region
          %s403 = smul.u32 4, %s29
          %p404 = scmp.lt.s32.totalorder %s28, 1
          %s405 = scalar_select %p404, %s28, 1
          %p406 = scmp.lt.s32.totalorder %s403, 3
          %s407 = scalar_select %p406, %s403, 3
          %s408 = smul.addr %s405, 4
          %s409 = sadd.s32 %s407, %s408
          %s410 = smul.addr %s409, 8
          %s411 = scalar_lea.vmem %s2, %s410
          %s412 = smul.u32 4, %s29
        $region56: #{tpu_custom_call.1} parent=43 // pred_fallthru
          _
        // Predicated region
        $region57: #{tpu_custom_call.1} parent=43 // pred_check
          %p413 = pneg %p135
        $region58: #{tpu_custom_call.1} parent=43 // pred_check_branch
          %415 = sbr.rel (%p413) target = $region60
        $region59: #{tpu_custom_call.1} parent=43 // pred_region
          %s416 = smul.u32 4, %s29
          %p417 = scmp.lt.s32.totalorder %s28, 1
          %s418 = scalar_select %p417, %s28, 1
          %p419 = scmp.lt.s32.totalorder %s416, 3
          %s420 = scalar_select %p419, %s416, 3
          %s421 = smul.addr %s418, 4
          %s422 = sadd.s32 %s420, %s421
          %s423 = smul.addr %s422, 4
          %s424 = scalar_lea.vmem %s3, %s423
          %s425 = smul.u32 4, %s29
        $region60: #{tpu_custom_call.1} parent=43 // pred_fallthru
          _
        // Predicated region
        $region61: #{tpu_custom_call.1} parent=43 // pred_check
          %p426 = pneg %p163
        $region62: #{tpu_custom_call.1} parent=43 // pred_check_branch
          %428 = sbr.rel (%p426) target = $region64
        $region63: #{tpu_custom_call.1} parent=43 // pred_region
          %s429 = smul.u32 4, %s29
          %p430 = scmp.lt.s32.totalorder %s28, 1
          %s431 = scalar_select %p430, %s28, 1
          %p432 = scmp.lt.s32.totalorder %s429, 3
          %s433 = scalar_select %p432, %s429, 3
          %s434 = smul.addr %s431, 4
          %s435 = sadd.s32 %s433, %s434
          %s436 = smul.addr %s435, 8
          %s437 = scalar_lea.vmem %s4, %s436
          %s438 = smul.u32 4, %s29
        $region64: #{tpu_custom_call.1} parent=43 // pred_fallthru
          _
      $region44: #{tpu_custom_call.1} parent=5 // pred_fallthru
        _
      %p439 = scmp.le.s32.totalorder 1, %s21
      %p440 = scmp.lt.s32.totalorder %s21, 3
      %p441 = pnand %p439, %p440
      %p442 = pneg %p441
      // Predicated region
      $region65: #{tpu_custom_call.1} parent=5 // pred_check
        _
      $region66: #{tpu_custom_call.1} parent=5 // pred_check_branch
        %444 = sbr.rel (%p441) target = $region68
      $region67: #{tpu_custom_call.1} parent=5 // pred_region
        %s445 = ssub.s32 %s21, 1
        %p446 = scmp.lt.s32.totalorder %s30, 1
        %s447 = scalar_select %p446, %s30, 1
        %s448 = smul.addr %s447, 8
        %s449 = smul.addr %s448, 8
        %s450 = scalar_lea.vmem %s0, %s449
        %p451 = pneg %p59
        %p452 = pneg %p56
        %p453 = scmp.lt.s32.totalorder %s30, 1
        %s454 = scalar_select %p453, %s30, 1
        %s455 = smul.addr %s454, 8
        %s456 = smul.addr %s455, 4
        %s457 = scalar_lea.vmem %s1, %s456
        %p458 = pneg %p85
        %p459 = pneg %p82
        %s460 = smul.u32 4, %s31
        %p461 = scmp.lt.s32.totalorder %s30, 1
        %s462 = scalar_select %p461, %s30, 1
        %p463 = scmp.lt.s32.totalorder %s460, 3
        %s464 = scalar_select %p463, %s460, 3
        %s465 = smul.addr %s462, 4
        %s466 = sadd.s32 %s464, %s465
        %s467 = smul.addr %s466, 8
        %s468 = scalar_lea.vmem %s2, %s467
        %p469 = pneg %p113
        %p470 = pneg %p110
        %s471 = smul.u32 4, %s31
        %p472 = scmp.lt.s32.totalorder %s30, 1
        %s473 = scalar_select %p472, %s30, 1
        %p474 = scmp.lt.s32.totalorder %s471, 3
        %s475 = scalar_select %p474, %s471, 3
        %s476 = smul.addr %s473, 4
        %s477 = sadd.s32 %s475, %s476
        %s478 = smul.addr %s477, 4
        %s479 = scalar_lea.vmem %s3, %s478
        %p480 = pneg %p141
        %p481 = pneg %p138
        %s482 = smul.u32 4, %s31
        %p483 = scmp.lt.s32.totalorder %s30, 1
        %s484 = scalar_select %p483, %s30, 1
        %p485 = scmp.lt.s32.totalorder %s482, 3
        %s486 = scalar_select %p485, %s482, 3
        %s487 = smul.addr %s484, 4
        %s488 = sadd.s32 %s486, %s487
        %s489 = smul.addr %s488, 8
        %s490 = scalar_lea.vmem %s4, %s489
        %p491 = pneg %p169
        %p492 = pneg %p166
        %p493 = pneg %p190
        %p494 = pneg %p187
        %p495 = pneg %p211
        %p496 = pneg %p208
        %p497 = pneg %p232
        %p498 = pneg %p229
        %p499 = pneg %p253
        %p500 = pneg %p250
        %p501 = pneg %p274
        %p502 = pneg %p271
        %p503 = pneg %p295
        %p504 = pneg %p292
        %p505 = pneg %p316
        %p506 = pneg %p313
        %p507 = pneg %p344
        %p508 = pneg %p341
        %s509 = sand.u32 %s331, 1
        %s510 = scalar_lea.sflag [#allocation3], %s509
        %s511 = sand.u32 %s331, 1
        %s512 = smul.addr %s511, 32
        %s513 = scalar_lea.vmem [#allocation2], %s512
        %p514 = scmp.lt.s32.totalorder %s30, 1
        %s515 = scalar_select %p514, %s30, 1
        %s516 = smul.addr %s515, 8
        %s517 = smul.addr %s516, 8
        %s518 = scalar_lea.vmem %s0, %s517
        %p519 = scmp.lt.s32.totalorder %s30, 1
        %s520 = scalar_select %p519, %s30, 1
        %s521 = smul.addr %s520, 8
        %s522 = smul.addr %s521, 4
        %s523 = scalar_lea.vmem %s1, %s522
        %s524 = smul.u32 4, %s31
        %p525 = scmp.lt.s32.totalorder %s30, 1
        %s526 = scalar_select %p525, %s30, 1
        %p527 = scmp.lt.s32.totalorder %s524, 3
        %s528 = scalar_select %p527, %s524, 3
        %s529 = smul.addr %s526, 4
        %s530 = sadd.s32 %s528, %s529
        %s531 = smul.addr %s530, 8
        %s532 = scalar_lea.vmem %s2, %s531
        %s533 = smul.u32 4, %s31
        %s534 = smul.u32 4, %s31
        %p535 = scmp.lt.s32.totalorder %s30, 1
        %s536 = scalar_select %p535, %s30, 1
        %p537 = scmp.lt.s32.totalorder %s534, 3
        %s538 = scalar_select %p537, %s534, 3
        %s539 = smul.addr %s536, 4
        %s540 = sadd.s32 %s538, %s539
        %s541 = smul.addr %s540, 4
        %s542 = scalar_lea.vmem %s3, %s541
        %s543 = smul.u32 4, %s31
        %s544 = smul.u32 4, %s31
        %p545 = scmp.lt.s32.totalorder %s30, 1
        %s546 = scalar_select %p545, %s30, 1
        %p547 = scmp.lt.s32.totalorder %s544, 3
        %s548 = scalar_select %p547, %s544, 3
        %s549 = smul.addr %s546, 4
        %s550 = sadd.s32 %s548, %s549
        %s551 = smul.addr %s550, 8
        %s552 = scalar_lea.vmem %s4, %s551
        %s553 = smul.u32 4, %s31
        %s554 = smul.u32 4, %s31
        %v556 = vld [vmem:[%s532] sm:$0xff]
        %v557 = vld [vmem:[%s532 + $0x8] sm:$0xff]
        %v558 = vld [vmem:[%s532 + $0x10] sm:$0xff]
        %v559 = vld [vmem:[%s532 + $0x18] sm:$0xff]
        %v560 = vld [vmem:[%s518] sm:$0xff]
        %v561 = vld [vmem:[%s518 + $0x8] sm:$0xff]
        %v562 = vld [vmem:[%s518 + $0x10] sm:$0xff]
        %v563 = vld [vmem:[%s518 + $0x18] sm:$0xff]
        %v564 = vld [vmem:[%s518 + $0x20] sm:$0xff]
        %v565 = vld [vmem:[%s518 + $0x28] sm:$0xff]
        %v566 = vld [vmem:[%s518 + $0x30] sm:$0xff]
        %v567 = vld [vmem:[%s518 + $0x38] sm:$0xff]
        %vm568 = vcmask 31744
        %v570 = vsel %vm568, %v556, 0
        %v573 = vsel %vm568, %v557, 0
        %v576 = vsel %vm568, %v558, 0
        %v579 = vsel %vm568, %v559, 0
        %v582 = vsel %vm568, %v560, 0
        %v585 = vsel %vm568, %v561, 0
        %v588 = vsel %vm568, %v562, 0
        %v591 = vsel %vm568, %v563, 0
        %v594 = vsel %vm568, %v564, 0
        %v597 = vsel %vm568, %v565, 0
        %v600 = vsel %vm568, %v566, 0
        %v603 = vsel %vm568, %v567, 0
        %605 = vmatprep.subr.mxu0 0.0
        %606 = vmatpush1.xpose.msra.mxu0 %v582
        %607 = vmatprep.subr.mxu0 0.0
        %608 = vmatpush1.xpose.msra.mxu0 %v585
        %609 = vmatprep.subr.mxu0 0.0
        %610 = vmatpush1.xpose.msra.mxu0 %v588
        %611 = vmatprep.subr.mxu0 0.0
        %612 = vmatpush1.xpose.msra.mxu0 %v591
        %613 = vmatprep.subr.mxu0 0.0
        %614 = vmatpush1.xpose.msra.mxu0 %v594
        %615 = vmatprep.subr.mxu0 0.0
        %616 = vmatpush1.xpose.msra.mxu0 %v597
        %617 = vmatprep.subr.mxu0 0.0
        %618 = vmatpush1.xpose.msra.mxu0 %v600
        %619 = vmatprep.subr.mxu0 0.0
        %620 = vmatpush1.xpose.msra.mxu0 %v603
        %621 = vmatprep.subr.mxu0 0.0
        %622 = vmatpush1.xpose.msra.mxu0 0.0
        %623 = vmatprep.subr.mxu0 0.0
        %624 = vmatpush1.xpose.msra.mxu0 0.0
        %625 = vmatprep.subr.mxu0 0.0
        %626 = vmatpush1.xpose.msra.mxu0 0.0
        %627 = vmatprep.subr.mxu0 0.0
        %628 = vmatpush1.xpose.msra.mxu0 0.0
        %629 = vmatprep.subr.mxu0 0.0
        %630 = vmatpush1.xpose.msra.mxu0 0.0
        %631 = vmatprep.subr.mxu0 0.0
        %632 = vmatpush1.xpose.msra.mxu0 0.0
        %633 = vmatprep.subr.mxu0 0.0
        %634 = vmatpush1.xpose.msra.mxu0 0.0
        %635 = vmatprep.subr.mxu0 0.0
        %636 = vmatpush1.xpose.msra.mxu0 0.0
        %637 = vmatprep.subr.mxu0 0.0
        %638 = vmatpush1.xpose.msra.mxu0 0.0
        %639 = vmatprep.subr.mxu0 0.0
        %640 = vmatpush1.xpose.msra.mxu0 0.0
        %641 = vmatprep.subr.mxu0 0.0
        %642 = vmatpush1.xpose.msra.mxu0 0.0
        %643 = vmatprep.subr.mxu0 0.0
        %644 = vmatpush1.xpose.msra.mxu0 0.0
        %645 = vmatprep.subr.mxu0 0.0
        %646 = vmatpush1.xpose.msra.mxu0 0.0
        %647 = vmatprep.subr.mxu0 0.0
        %648 = vmatpush1.xpose.msra.mxu0 0.0
        %649 = vmatprep.subr.mxu0 0.0
        %650 = vmatpush1.xpose.msra.mxu0 0.0
        %651 = vmatprep.subr.mxu0 0.0
        %652 = vmatpush1.xpose.msra.mxu0 0.0
        %653 = vmatprep.subr.mxu0 0.0
        %654 = vmatpush1.xpose.msra.mxu0 0.0
        %655 = vmatprep.subr.mxu0 0.0
        %656 = vmatpush1.xpose.msra.mxu0 0.0
        %657 = vmatprep.subr.mxu0 0.0
        %658 = vmatpush1.xpose.msra.mxu0 0.0
        %659 = vmatprep.subr.mxu0 0.0
        %660 = vmatpush1.xpose.msra.mxu0 0.0
        %661 = vmatprep.subr.mxu0 0.0
        %662 = vmatpush1.xpose.msra.mxu0 0.0
        %663 = vmatprep.subr.mxu0 0.0
        %664 = vmatpush1.xpose.msra.mxu0 0.0
        %665 = vmatprep.subr.mxu0 0.0
        %666 = vmatpush1.xpose.msra.mxu0 0.0
        %667 = vmatprep.subr.mxu0 0.0
        %668 = vmatpush1.xpose.msra.mxu0 0.0
        %669 = vmatprep.mubr.f32.mxu0 0.0
        %670 = vmatmul.mubr.f32.gmra.mrb[0].mxu0 %v570
        %v671 = vpop.f32.mrb[0].mxu0
        %v672 = vadd.f32 0.0, %v671
        %v673 = vpop.f32.mrb[0].mxu0
        %674 = vmatprep.mubr.f32.mxu0 0.0
        %675 = vmatmul.mubr.f32.gmra.mrb[0].mxu0 %v573
        %v676 = vpop.f32.mrb[0].mxu0
        %v677 = vadd.f32 0.0, %v676
        %v678 = vpop.f32.mrb[0].mxu0
        %679 = vmatprep.mubr.f32.mxu0 0.0
        %680 = vmatmul.mubr.f32.gmra.mrb[0].mxu0 %v576
        %v681 = vpop.f32.mrb[0].mxu0
        %v682 = vadd.f32 0.0, %v681
        %v683 = vpop.f32.mrb[0].mxu0
        %684 = vmatprep.mubr.f32.mxu0 0.0
        %685 = vmatmul.mubr.f32.gmra.mrb[0].mxu0 %v579
        %v686 = vpop.f32.mrb[0].mxu0
        %v687 = vadd.f32 0.0, %v686
        %v688 = vpop.f32.mrb[0].mxu0
        %689 = vdwg.mxu0
        %vm690 = vcmask 523264
        %v691 = vsel %vm690, %v672, -inf
        %692 = vmax.xlane.f32.xlu0 %v691
        %v693 = vpop.xlane.xlu0 %692
        %v694 = vsel %vm690, %v677, -inf
        %695 = vmax.xlane.f32.xlu0 %v694
        %v696 = vpop.xlane.xlu0 %695
        %v697 = vsel %vm690, %v682, -inf
        %698 = vmax.xlane.f32.xlu0 %v697
        %v699 = vpop.xlane.xlu0 %698
        %v700 = vsel %vm690, %v687, -inf
        %701 = vmax.xlane.f32.xlu0 %v700
        %v702 = vpop.xlane.xlu0 %701
        %v703 = vsub.f32 %v672, %v693
        %v704 = vsub.f32 %v677, %v696
        %v705 = vsub.f32 %v682, %v699
        %v706 = vsub.f32 %v687, %v702
        %v707 = vmul.f32 %v703, 1.442695
        %v708 = vpow.pop %v707
        %v709 = vmul.f32 %v704, 1.442695
        %v710 = vpow.pop %v709
        %v711 = vmul.f32 %v705, 1.442695
        %v712 = vpow.pop %v711
        %v713 = vmul.f32 %v706, 1.442695
        %v714 = vpow.pop %v713
        %v715 = vsel %vm690, %v708, 0.0
        %716 = vadd.xlane.f32.xlu0 %v715
        %v717 = vpop.xlane.xlu0 %716
        %v718 = vsel %vm690, %v710, 0.0
        %719 = vadd.xlane.f32.xlu0 %v718
        %v720 = vpop.xlane.xlu0 %719
        %v721 = vsel %vm690, %v712, 0.0
        %722 = vadd.xlane.f32.xlu0 %v721
        %v723 = vpop.xlane.xlu0 %722
        %v724 = vsel %vm690, %v714, 0.0
        %725 = vadd.xlane.f32.xlu0 %v724
        %v726 = vpop.xlane.xlu0 %725
        %v727 = vrcp.pop %v717
        %v728 = vrcp.pop %v720
        %v729 = vrcp.pop %v723
        %v730 = vrcp.pop %v726
        %v731 = vmul.f32 %v708, %v727
        %v732 = vmul.f32 %v710, %v728
        %v733 = vmul.f32 %v712, %v729
        %v734 = vmul.f32 %v714, %v730
        %v735 = vpack.c.bf16 %v732, %v731
        %v736 = vpack.c.bf16 %v734, %v733
        %v737 = vld [vmem:[%s523] sm:$0xf]
        %v738 = vld [vmem:[%s523 + $0x4] sm:$0xf]
        %v739 = vld [vmem:[%s523 + $0x8] sm:$0xf]
        %v740 = vld [vmem:[%s523 + $0xc] sm:$0xf]
        %v741 = vld [vmem:[%s523 + $0x10] sm:$0xf]
        %v742 = vld [vmem:[%s523 + $0x14] sm:$0xf]
        %v743 = vld [vmem:[%s523 + $0x18] sm:$0xf]
        %v744 = vld [vmem:[%s523 + $0x1c] sm:$0xf]
        %v753 = vunpack.c.l.b16 %v737
        %v754 = vunpack.c.l.b16 %v738
        %v755 = vunpack.c.l.b16 %v739
        %v756 = vunpack.c.l.b16 %v740
        %v757 = vunpack.c.l.b16 %v741
        %v758 = vunpack.c.l.b16 %v742
        %v759 = vunpack.c.l.b16 %v743
        %v760 = vunpack.c.l.b16 %v744
        %v761 = vpack.c.b16 %v754, %v753
        %v762 = vpack.c.b16 %v756, %v755
        %v763 = vpack.c.b16 %v758, %v757
        %v764 = vpack.c.b16 %v760, %v759
        %v770 = vsel %vm690, %v735, 0
        %v773 = vsel %vm690, %v736, 0
        %775 = vmatprep.subr.bf16.mxu0 0
        %776 = vmatpush1.bf16.msra.mxu0 %v761
        %777 = vmatprep.subr.bf16.mxu0 0
        %778 = vmatpush1.bf16.msra.mxu0 %v762
        %779 = vmatprep.subr.bf16.mxu0 0
        %780 = vmatpush1.bf16.msra.mxu0 %v763
        %781 = vmatprep.subr.bf16.mxu0 0
        %782 = vmatpush1.bf16.msra.mxu0 %v764
        %783 = vmatprep.subr.bf16.mxu0 0
        %784 = vmatpush1.bf16.msra.mxu0 0
        %785 = vmatprep.subr.bf16.mxu0 0
        %786 = vmatpush1.bf16.msra.mxu0 0
        %787 = vmatprep.subr.bf16.mxu0 0
        %788 = vmatpush1.bf16.msra.mxu0 0
        %789 = vmatprep.subr.bf16.mxu0 0
        %790 = vmatpush1.bf16.msra.mxu0 0
        %791 = vmatprep.subr.bf16.mxu0 0
        %792 = vmatpush1.bf16.msra.mxu0 0
        %793 = vmatprep.subr.bf16.mxu0 0
        %794 = vmatpush1.bf16.msra.mxu0 0
        %795 = vmatprep.subr.bf16.mxu0 0
        %796 = vmatpush1.bf16.msra.mxu0 0
        %797 = vmatprep.subr.bf16.mxu0 0
        %798 = vmatpush1.bf16.msra.mxu0 0
        %799 = vmatprep.subr.bf16.mxu0 0
        %800 = vmatpush1.bf16.msra.mxu0 0
        %801 = vmatprep.subr.bf16.mxu0 0
        %802 = vmatpush1.bf16.msra.mxu0 0
        %803 = vmatprep.subr.bf16.mxu0 0
        %804 = vmatpush1.bf16.msra.mxu0 0
        %805 = vmatprep.subr.bf16.mxu0 0
        %806 = vmatpush1.bf16.msra.mxu0 0
        %807 = vmatprep.mubr.bf16.mxu0 0
        %808 = vmatmul.mubr.bf16.gmra.mrb[0].mxu0 %v770
        %v809 = vpop.f32.mrb[0].mxu0
        %v810 = vadd.f32 0.0, %v809
        %v811 = vpop.f32.mrb[0].mxu0
        %v812 = vpop.f32.mrb[0].mxu0
        %v813 = vadd.f32 0.0, %v812
        %v814 = vpop.f32.mrb[0].mxu0
        %815 = vmatprep.mubr.bf16.mxu0 0
        %816 = vmatmul.mubr.bf16.gmra.mrb[0].mxu0 %v773
        %v817 = vpop.f32.mrb[0].mxu0
        %v818 = vadd.f32 0.0, %v817
        %v819 = vpop.f32.mrb[0].mxu0
        %v820 = vpop.f32.mrb[0].mxu0
        %v821 = vadd.f32 0.0, %v820
        %v822 = vpop.f32.mrb[0].mxu0
        %823 = vdwg.mxu0
        %v824 = vpack.c.bf16 %v813, %v810
        %v825 = vpack.c.bf16 %v821, %v818
        %v826 = vld [vmem:[%s542] sm:$0xf]
        %v827 = vld [vmem:[%s542 + $0x4] sm:$0xf]
        %v828 = vld [vmem:[%s542 + $0x8] sm:$0xf]
        %v829 = vld [vmem:[%s542 + $0xc] sm:$0xf]
        %v830 = vld [vmem:[%s5] sm:$0xf]
        %v831 = vld [vmem:[%s5 + $0x4] sm:$0xf]
        %v832 = vld [vmem:[%s5 + $0x8] sm:$0xf]
        %v833 = vld [vmem:[%s5 + $0xc] sm:$0xf]
        %v834 = vld [vmem:[%s6] sm:$0xf]
        %v835 = vld [vmem:[%s6 + $0x4] sm:$0xf]
        %v836 = vld [vmem:[%s6 + $0x8] sm:$0xf]
        %v837 = vld [vmem:[%s6 + $0xc] sm:$0xf]
        %v842 = vunpack.c.l.b16 %v834
        %v843 = vunpack.c.l.b16 %v835
        %v844 = vunpack.c.l.b16 %v836
        %v845 = vunpack.c.l.b16 %v837
        %v846 = vpack.c.b16 %v843, %v842
        %v847 = vpack.c.b16 %v845, %v844
        %vm850 = vcmask 261120
        %v852 = vsel %vm850, %v824, 0
        %v855 = vsel %vm850, %v825, 0
        %857 = vmatprep.subr.bf16.mxu0 0
        %858 = vmatpush1.bf16.msra.mxu0 %v846
        %859 = vmatprep.subr.bf16.mxu0 0
        %860 = vmatpush1.bf16.msra.mxu0 %v847
        %861 = vmatprep.subr.bf16.mxu0 0
        %862 = vmatpush1.bf16.msra.mxu0 0
        %863 = vmatprep.subr.bf16.mxu0 0
        %864 = vmatpush1.bf16.msra.mxu0 0
        %865 = vmatprep.subr.bf16.mxu0 0
        %866 = vmatpush1.bf16.msra.mxu0 0
        %867 = vmatprep.subr.bf16.mxu0 0
        %868 = vmatpush1.bf16.msra.mxu0 0
        %869 = vmatprep.subr.bf16.mxu0 0
        %870 = vmatpush1.bf16.msra.mxu0 0
        %871 = vmatprep.subr.bf16.mxu0 0
        %872 = vmatpush1.bf16.msra.mxu0 0
        %873 = vmatprep.subr.bf16.mxu0 0
        %874 = vmatpush1.bf16.msra.mxu0 0
        %875 = vmatprep.subr.bf16.mxu0 0
        %876 = vmatpush1.bf16.msra.mxu0 0
        %877 = vmatprep.subr.bf16.mxu0 0
        %878 = vmatpush1.bf16.msra.mxu0 0
        %879 = vmatprep.subr.bf16.mxu0 0
        %880 = vmatpush1.bf16.msra.mxu0 0
        %881 = vmatprep.subr.bf16.mxu0 0
        %882 = vmatpush1.bf16.msra.mxu0 0
        %883 = vmatprep.subr.bf16.mxu0 0
        %884 = vmatpush1.bf16.msra.mxu0 0
        %885 = vmatprep.subr.bf16.mxu0 0
        %886 = vmatpush1.bf16.msra.mxu0 0
        %887 = vmatprep.subr.bf16.mxu0 0
        %888 = vmatpush1.bf16.msra.mxu0 0
        %889 = vmatprep.mubr.bf16.mxu0 0
        %890 = vmatmul.mubr.bf16.gmra.mrb[0].mxu0 %v852
        %v891 = vpop.f32.mrb[0].mxu0
        %v892 = vadd.f32 0.0, %v891
        %v893 = vpop.f32.mrb[0].mxu0
        %v894 = vpop.f32.mrb[0].mxu0
        %v895 = vadd.f32 0.0, %v894
        %v896 = vpop.f32.mrb[0].mxu0
        %897 = vmatprep.mubr.bf16.mxu0 0
        %898 = vmatmul.mubr.bf16.gmra.mrb[0].mxu0 %v855
        %v899 = vpop.f32.mrb[0].mxu0
        %v900 = vadd.f32 0.0, %v899
        %v901 = vpop.f32.mrb[0].mxu0
        %v902 = vpop.f32.mrb[0].mxu0
        %v903 = vadd.f32 0.0, %v902
        %v904 = vpop.f32.mrb[0].mxu0
        %905 = vdwg.mxu0
        %v910 = vunpack.c.l.b16 %v826
        %v911 = vunpack.c.l.b16 %v827
        %v912 = vunpack.c.l.b16 %v828
        %v913 = vunpack.c.l.b16 %v829
        %v914 = vpack.c.b16 %v911, %v910
        %v915 = vpack.c.b16 %v913, %v912
        %v920 = vunpack.c.l.b16 %v830
        %v921 = vunpack.c.l.b16 %v831
        %v922 = vunpack.c.l.b16 %v832
        %v923 = vunpack.c.l.b16 %v833
        %v924 = vpack.c.b16 %v921, %v920
        %v925 = vpack.c.b16 %v923, %v922
        %v929 = vsel %vm850, %v914, 0
        %v932 = vsel %vm850, %v915, 0
        %934 = vmatprep.subr.bf16.mxu0 0
        %935 = vmatpush1.bf16.msra.mxu0 %v924
        %936 = vmatprep.subr.bf16.mxu0 0
        %937 = vmatpush1.bf16.msra.mxu0 %v925
        %938 = vmatprep.subr.bf16.mxu0 0
        %939 = vmatpush1.bf16.msra.mxu0 0
        %940 = vmatprep.subr.bf16.mxu0 0
        %941 = vmatpush1.bf16.msra.mxu0 0
        %942 = vmatprep.subr.bf16.mxu0 0
        %943 = vmatpush1.bf16.msra.mxu0 0
        %944 = vmatprep.subr.bf16.mxu0 0
        %945 = vmatpush1.bf16.msra.mxu0 0
        %946 = vmatprep.subr.bf16.mxu0 0
        %947 = vmatpush1.bf16.msra.mxu0 0
        %948 = vmatprep.subr.bf16.mxu0 0
        %949 = vmatpush1.bf16.msra.mxu0 0
        %950 = vmatprep.subr.bf16.mxu0 0
        %951 = vmatpush1.bf16.msra.mxu0 0
        %952 = vmatprep.subr.bf16.mxu0 0
        %953 = vmatpush1.bf16.msra.mxu0 0
        %954 = vmatprep.subr.bf16.mxu0 0
        %955 = vmatpush1.bf16.msra.mxu0 0
        %956 = vmatprep.subr.bf16.mxu0 0
        %957 = vmatpush1.bf16.msra.mxu0 0
        %958 = vmatprep.subr.bf16.mxu0 0
        %959 = vmatpush1.bf16.msra.mxu0 0
        %960 = vmatprep.subr.bf16.mxu0 0
        %961 = vmatpush1.bf16.msra.mxu0 0
        %962 = vmatprep.subr.bf16.mxu0 0
        %963 = vmatpush1.bf16.msra.mxu0 0
        %964 = vmatprep.subr.bf16.mxu0 0
        %965 = vmatpush1.bf16.msra.mxu0 0
        %966 = vmatprep.mubr.bf16.mxu0 0
        %967 = vmatmul.mubr.bf16.gmra.mrb[0].mxu0 %v929
        %v968 = vpop.f32.mrb[0].mxu0
        %v969 = vadd.f32 %v892, %v968
        %v970 = vpop.f32.mrb[0].mxu0
        %v971 = vpop.f32.mrb[0].mxu0
        %v972 = vadd.f32 %v895, %v971
        %v973 = vpop.f32.mrb[0].mxu0
        %974 = vmatprep.mubr.bf16.mxu0 0
        %975 = vmatmul.mubr.bf16.gmra.mrb[0].mxu0 %v932
        %v976 = vpop.f32.mrb[0].mxu0
        %v977 = vadd.f32 %v900, %v976
        %v978 = vpop.f32.mrb[0].mxu0
        %v979 = vpop.f32.mrb[0].mxu0
        %v980 = vadd.f32 %v903, %v979
        %v981 = vpop.f32.mrb[0].mxu0
        %982 = vdwg.mxu0
        %v983 = vld [vmem:[%s7] sm:$0x1]
        %v985 = vlaneseq
        %v986 = vshrl.u32 %v985, 7
        %v987 = vsub.s32 0, %v986
        %v988 = vrot.slane %v983, %v987
        %v990 = vadd.f32 %v969, %v988
        %v991 = vadd.f32 %v972, %v988
        %v992 = vadd.f32 %v977, %v988
        %v993 = vadd.f32 %v980, %v988
        %v994 = vmax.f32 %v990, 0.0
        %v995 = vmax.f32 %v991, 0.0
        %v996 = vmax.f32 %v992, 0.0
        %v997 = vmax.f32 %v993, 0.0
        %v998 = vpack.c.bf16 %v995, %v994
        %v999 = vpack.c.bf16 %v997, %v996
        %v1000 = vld [vmem:[%s8] sm:$0xf]
        %v1001 = vld [vmem:[%s8 + $0x4] sm:$0xf]
        %v1002 = vld [vmem:[%s8 + $0x8] sm:$0xf]
        %v1003 = vld [vmem:[%s8 + $0xc] sm:$0xf]
        %v1004 = vld [vmem:[%s8 + $0x10] sm:$0xf]
        %v1005 = vld [vmem:[%s8 + $0x14] sm:$0xf]
        %v1006 = vld [vmem:[%s8 + $0x18] sm:$0xf]
        %v1007 = vld [vmem:[%s8 + $0x1c] sm:$0xf]
        %v1008 = vld [vmem:[%s8 + $0x20] sm:$0xf]
        %v1009 = vld [vmem:[%s8 + $0x24] sm:$0xf]
        %v1010 = vld [vmem:[%s8 + $0x28] sm:$0xf]
        %v1011 = vld [vmem:[%s8 + $0x2c] sm:$0xf]
        %v1012 = vld [vmem:[%s8 + $0x30] sm:$0xf]
        %v1013 = vld [vmem:[%s8 + $0x34] sm:$0xf]
        %v1014 = vld [vmem:[%s8 + $0x38] sm:$0xf]
        %v1015 = vld [vmem:[%s8 + $0x3c] sm:$0xf]
        %v1016 = vld [vmem:[%s9] sm:$0x1]
        %v1018 = vlaneseq
        %v1019 = vshrl.u32 %v1018, 7
        %v1020 = vsub.s32 0, %v1019
        %v1021 = vrot.slane %v1016, %v1020
        %v1039 = vunpack.c.l.b16 %v1000
        %v1040 = vunpack.c.l.b16 %v1001
        %v1041 = vunpack.c.l.b16 %v1002
        %v1042 = vunpack.c.l.b16 %v1003
        %v1043 = vunpack.c.l.b16 %v1004
        %v1044 = vunpack.c.l.b16 %v1005
        %v1045 = vunpack.c.l.b16 %v1006
        %v1046 = vunpack.c.l.b16 %v1007
        %v1047 = vunpack.c.l.b16 %v1008
        %v1048 = vunpack.c.l.b16 %v1009
        %v1049 = vunpack.c.l.b16 %v1010
        %v1050 = vunpack.c.l.b16 %v1011
        %v1051 = vunpack.c.l.b16 %v1012
        %v1052 = vunpack.c.l.b16 %v1013
        %v1053 = vunpack.c.l.b16 %v1014
        %v1054 = vunpack.c.l.b16 %v1015
        %v1055 = vpack.c.b16 %v1040, %v1039
        %v1056 = vpack.c.b16 %v1042, %v1041
        %v1057 = vpack.c.b16 %v1044, %v1043
        %v1058 = vpack.c.b16 %v1046, %v1045
        %v1059 = vpack.c.b16 %v1048, %v1047
        %v1060 = vpack.c.b16 %v1050, %v1049
        %v1061 = vpack.c.b16 %v1052, %v1051
        %v1062 = vpack.c.b16 %v1054, %v1053
        %1071 = vmatprep.subr.bf16.mxu0 0
        %1072 = vmatpush1.bf16.msra.mxu0 %v1055
        %1073 = vmatprep.subr.bf16.mxu0 0
        %1074 = vmatpush1.bf16.msra.mxu0 %v1056
        %1075 = vmatprep.subr.bf16.mxu0 0
        %1076 = vmatpush1.bf16.msra.mxu0 %v1057
        %1077 = vmatprep.subr.bf16.mxu0 0
        %1078 = vmatpush1.bf16.msra.mxu0 %v1058
        %1079 = vmatprep.subr.bf16.mxu0 0
        %1080 = vmatpush1.bf16.msra.mxu0 %v1059
        %1081 = vmatprep.subr.bf16.mxu0 0
        %1082 = vmatpush1.bf16.msra.mxu0 %v1060
        %1083 = vmatprep.subr.bf16.mxu0 0
        %1084 = vmatpush1.bf16.msra.mxu0 %v1061
        %1085 = vmatprep.subr.bf16.mxu0 0
        %1086 = vmatpush1.bf16.msra.mxu0 %v1062
        %1087 = vmatprep.subr.bf16.mxu0 0
        %1088 = vmatpush1.bf16.msra.mxu0 0
        %1089 = vmatprep.subr.bf16.mxu0 0
        %1090 = vmatpush1.bf16.msra.mxu0 0
        %1091 = vmatprep.subr.bf16.mxu0 0
        %1092 = vmatpush1.bf16.msra.mxu0 0
        %1093 = vmatprep.subr.bf16.mxu0 0
        %1094 = vmatpush1.bf16.msra.mxu0 0
        %1095 = vmatprep.subr.bf16.mxu0 0
        %1096 = vmatpush1.bf16.msra.mxu0 0
        %1097 = vmatprep.subr.bf16.mxu0 0
        %1098 = vmatpush1.bf16.msra.mxu0 0
        %1099 = vmatprep.subr.bf16.mxu0 0
        %1100 = vmatpush1.bf16.msra.mxu0 0
        %1101 = vmatprep.subr.bf16.mxu0 0
        %1102 = vmatpush1.bf16.msra.mxu0 0
        %1103 = vmatprep.mubr.bf16.mxu0 0
        %1104 = vmatmul.mubr.bf16.gmra.mrb[0].mxu0 %v998
        %v1105 = vpop.f32.mrb[0].mxu0
        %v1106 = vadd.f32 %v1021, %v1105
        %v1107 = vpop.f32.mrb[0].mxu0
        %v1108 = vpop.f32.mrb[0].mxu0
        %v1109 = vadd.f32 %v1021, %v1108
        %v1110 = vpop.f32.mrb[0].mxu0
        %1111 = vmatprep.mubr.bf16.mxu0 0
        %1112 = vmatmul.mubr.bf16.gmra.mrb[0].mxu0 %v999
        %v1113 = vpop.f32.mrb[0].mxu0
        %v1114 = vadd.f32 %v1021, %v1113
        %v1115 = vpop.f32.mrb[0].mxu0
        %v1116 = vpop.f32.mrb[0].mxu0
        %v1117 = vadd.f32 %v1021, %v1116
        %v1118 = vpop.f32.mrb[0].mxu0
        %1119 = vdwg.mxu0
        %v1120 = vmax.f32 %v1106, 0.0
        %v1121 = vmax.f32 %v1109, 0.0
        %v1122 = vmax.f32 %v1114, 0.0
        %v1123 = vmax.f32 %v1117, 0.0
        %v1124 = vpack.c.bf16 %v1121, %v1120
        %v1125 = vpack.c.bf16 %v1123, %v1122
        %v1126 = vld [vmem:[%s10] sm:$0xf]
        %v1127 = vld [vmem:[%s10 + $0x4] sm:$0xf]
        %v1128 = vld [vmem:[%s10 + $0x8] sm:$0xf]
        %v1129 = vld [vmem:[%s10 + $0xc] sm:$0xf]
        %v1130 = vld [vmem:[%s10 + $0x10] sm:$0xf]
        %v1131 = vld [vmem:[%s10 + $0x14] sm:$0xf]
        %v1132 = vld [vmem:[%s10 + $0x18] sm:$0xf]
        %v1133 = vld [vmem:[%s10 + $0x1c] sm:$0xf]
        %v1134 = vld [vmem:[%s10 + $0x20] sm:$0xf]
        %v1135 = vld [vmem:[%s10 + $0x24] sm:$0xf]
        %v1136 = vld [vmem:[%s10 + $0x28] sm:$0xf]
        %v1137 = vld [vmem:[%s10 + $0x2c] sm:$0xf]
        %v1138 = vld [vmem:[%s10 + $0x30] sm:$0xf]
        %v1139 = vld [vmem:[%s10 + $0x34] sm:$0xf]
        %v1140 = vld [vmem:[%s10 + $0x38] sm:$0xf]
        %v1141 = vld [vmem:[%s10 + $0x3c] sm:$0xf]
        %v1142 = vld [vmem:[%s11] sm:$0x1]
        %v1144 = vlaneseq
        %v1145 = vshrl.u32 %v1144, 7
        %v1146 = vsub.s32 0, %v1145
        %v1147 = vrot.slane %v1142, %v1146
        %v1165 = vunpack.c.l.b16 %v1126
        %v1166 = vunpack.c.l.b16 %v1127
        %v1167 = vunpack.c.l.b16 %v1128
        %v1168 = vunpack.c.l.b16 %v1129
        %v1169 = vunpack.c.l.b16 %v1130
        %v1170 = vunpack.c.l.b16 %v1131
        %v1171 = vunpack.c.l.b16 %v1132
        %v1172 = vunpack.c.l.b16 %v1133
        %v1173 = vunpack.c.l.b16 %v1134
        %v1174 = vunpack.c.l.b16 %v1135
        %v1175 = vunpack.c.l.b16 %v1136
        %v1176 = vunpack.c.l.b16 %v1137
        %v1177 = vunpack.c.l.b16 %v1138
        %v1178 = vunpack.c.l.b16 %v1139
        %v1179 = vunpack.c.l.b16 %v1140
        %v1180 = vunpack.c.l.b16 %v1141
        %v1181 = vpack.c.b16 %v1166, %v1165
        %v1182 = vpack.c.b16 %v1168, %v1167
        %v1183 = vpack.c.b16 %v1170, %v1169
        %v1184 = vpack.c.b16 %v1172, %v1171
        %v1185 = vpack.c.b16 %v1174, %v1173
        %v1186 = vpack.c.b16 %v1176, %v1175
        %v1187 = vpack.c.b16 %v1178, %v1177
        %v1188 = vpack.c.b16 %v1180, %v1179
        %1197 = vmatprep.subr.bf16.mxu0 0
        %1198 = vmatpush1.bf16.msra.mxu0 %v1181
        %1199 = vmatprep.subr.bf16.mxu0 0
        %1200 = vmatpush1.bf16.msra.mxu0 %v1182
        %1201 = vmatprep.subr.bf16.mxu0 0
        %1202 = vmatpush1.bf16.msra.mxu0 %v1183
        %1203 = vmatprep.subr.bf16.mxu0 0
        %1204 = vmatpush1.bf16.msra.mxu0 %v1184
        %1205 = vmatprep.subr.bf16.mxu0 0
        %1206 = vmatpush1.bf16.msra.mxu0 %v1185
        %1207 = vmatprep.subr.bf16.mxu0 0
        %1208 = vmatpush1.bf16.msra.mxu0 %v1186
        %1209 = vmatprep.subr.bf16.mxu0 0
        %1210 = vmatpush1.bf16.msra.mxu0 %v1187
        %1211 = vmatprep.subr.bf16.mxu0 0
        %1212 = vmatpush1.bf16.msra.mxu0 %v1188
        %1213 = vmatprep.subr.bf16.mxu0 0
        %1214 = vmatpush1.bf16.msra.mxu0 0
        %1215 = vmatprep.subr.bf16.mxu0 0
        %1216 = vmatpush1.bf16.msra.mxu0 0
        %1217 = vmatprep.subr.bf16.mxu0 0
        %1218 = vmatpush1.bf16.msra.mxu0 0
        %1219 = vmatprep.subr.bf16.mxu0 0
        %1220 = vmatpush1.bf16.msra.mxu0 0
        %1221 = vmatprep.subr.bf16.mxu0 0
        %1222 = vmatpush1.bf16.msra.mxu0 0
        %1223 = vmatprep.subr.bf16.mxu0 0
        %1224 = vmatpush1.bf16.msra.mxu0 0
        %1225 = vmatprep.subr.bf16.mxu0 0
        %1226 = vmatpush1.bf16.msra.mxu0 0
        %1227 = vmatprep.subr.bf16.mxu0 0
        %1228 = vmatpush1.bf16.msra.mxu0 0
        %1229 = vmatprep.mubr.bf16.mxu0 0
        %1230 = vmatmul.mubr.bf16.gmra.mrb[0].mxu0 %v1124
        %v1231 = vpop.f32.mrb[0].mxu0
        %v1232 = vadd.f32 %v1147, %v1231
        %v1233 = vpop.f32.mrb[0].mxu0
        %v1234 = vpop.f32.mrb[0].mxu0
        %v1235 = vadd.f32 %v1147, %v1234
        %v1236 = vpop.f32.mrb[0].mxu0
        %1237 = vmatprep.mubr.bf16.mxu0 0
        %1238 = vmatmul.mubr.bf16.gmra.mrb[0].mxu0 %v1125
        %v1239 = vpop.f32.mrb[0].mxu0
        %v1240 = vadd.f32 %v1147, %v1239
        %v1241 = vpop.f32.mrb[0].mxu0
        %v1242 = vpop.f32.mrb[0].mxu0
        %v1243 = vadd.f32 %v1147, %v1242
        %v1244 = vpop.f32.mrb[0].mxu0
        %1245 = vdwg.mxu0
        %v1246 = vlaneseq
        %v1247 = vand.u32 %v1246, 127
        %vm1248 = vcmp.ge.s32.totalorder %v1247, 15
        %vm1249 = vcmp.lt.s32.totalorder %v1247, 24
        %vm1250 = vmand %vm1248, %vm1249
        %v1251 = vsel %vm1250, %v1232, -1e+30
        %v1252 = vsel %vm1250, %v1235, -1e+30
        %v1253 = vsel %vm1250, %v1240, -1e+30
        %v1254 = vsel %vm1250, %v1243, -1e+30
        %1255 = vmax.xlane.f32.xlu0 %v1251
        %v1256 = vpop.xlane.xlu0 %1255
        %1257 = vmax.xlane.f32.xlu0 %v1252
        %v1258 = vpop.xlane.xlu0 %1257
        %1259 = vmax.xlane.f32.xlu0 %v1253
        %v1260 = vpop.xlane.xlu0 %1259
        %1261 = vmax.xlane.f32.xlu0 %v1254
        %v1262 = vpop.xlane.xlu0 %1261
        %v1263 = vsub.f32 %v1251, %v1256
        %v1264 = vsub.f32 %v1252, %v1258
        %v1265 = vsub.f32 %v1253, %v1260
        %v1266 = vsub.f32 %v1254, %v1262
        %v1267 = vmul.f32 %v1263, 1.442695
        %v1268 = vpow.pop %v1267
        %v1269 = vmul.f32 %v1264, 1.442695
        %v1270 = vpow.pop %v1269
        %v1271 = vmul.f32 %v1265, 1.442695
        %v1272 = vpow.pop %v1271
        %v1273 = vmul.f32 %v1266, 1.442695
        %v1274 = vpow.pop %v1273
        %1275 = vadd.xlane.f32.xlu0 %v1268
        %v1276 = vpop.xlane.xlu0 %1275
        %1277 = vadd.xlane.f32.xlu0 %v1270
        %v1278 = vpop.xlane.xlu0 %1277
        %1279 = vadd.xlane.f32.xlu0 %v1272
        %v1280 = vpop.xlane.xlu0 %1279
        %1281 = vadd.xlane.f32.xlu0 %v1274
        %v1282 = vpop.xlane.xlu0 %1281
        %v1283 = vrcp.pop %v1276
        %v1284 = vmul.f32 %v1268, %v1283
        %v1285 = vrcp.pop %v1278
        %v1286 = vmul.f32 %v1270, %v1285
        %v1287 = vrcp.pop %v1280
        %v1288 = vmul.f32 %v1272, %v1287
        %v1289 = vrcp.pop %v1282
        %v1290 = vmul.f32 %v1274, %v1289
        %v1291 = vsel %vm1250, %v1284, %v1232
        %v1292 = vsel %vm1250, %v1286, %v1235
        %v1293 = vsel %vm1250, %v1288, %v1240
        %v1294 = vsel %vm1250, %v1290, %v1243
        %v1295 = vld [vmem:[%s552] sm:$0xff]
        %v1296 = vld [vmem:[%s552 + $0x8] sm:$0xff]
        %v1297 = vld [vmem:[%s552 + $0x10] sm:$0xff]
        %v1298 = vld [vmem:[%s552 + $0x18] sm:$0xff]
        %v1299 = vadd.f32 %v1291, %v1295
        %v1300 = vadd.f32 %v1292, %v1296
        %v1301 = vadd.f32 %v1293, %v1297
        %v1302 = vadd.f32 %v1294, %v1298
        %1303 = vst [vmem:[%s513] sm:$0xff] %v1299
        %1304 = vst [vmem:[%s513 + $0x8] sm:$0xff] %v1300
        %1305 = vst [vmem:[%s513 + $0x10] sm:$0xff] %v1301
        %1306 = vst [vmem:[%s513 + $0x18] sm:$0xff] %v1302
        %s1307 = sand.u32 %s331, 1
        %s1308 = scalar_lea.sflag [#allocation3], %s1307
        %s1309 = sand.u32 %s331, 1
        %s1310 = smul.addr %s1309, 32
        %s1311 = scalar_lea.vmem [#allocation2], %s1310
        // Predicated region
        $region69: #{tpu_custom_call.1} parent=67 // pred_check
          %p1312 = pneg %p341
        $region70: #{tpu_custom_call.1} parent=67 // pred_check_branch
          %1314 = sbr.rel (%p1312) target = $region72
        $region71: #{tpu_custom_call.1} parent=67 // pred_region
          %s1315 = smul.u32 4, %s31
          %s1317 = ssub.s32 512, 512
          %1318 = vsyncadd %s1308, %s1317
          %s1319 = smul.addr %s30, 4
          %s1320 = sadd.s32 %s1315, %s1319
          %s1321 = smul.addr %s1320, 128
          %s1322 = scalar_lea.hbm %s12, %s1321
          %s1323 = sshll.u32 %s1311, 4
          %s1324 = int_to_ptr.vmem [resolvable:$true] %s1323
          %1329 = dma.vmem_to_hbm [thread:$0]  %s1324, 512, %s1322, %s1308, 128, 128, 8
        $region72: #{tpu_custom_call.1} parent=67 // pred_fallthru
          _
      $region68: #{tpu_custom_call.1} parent=5 // pred_fallthru
        _
      %p1330 = scmp.le.s32.totalorder 2, %s21
      // Predicated region
      $region73: #{tpu_custom_call.1} parent=5 // pred_check
        %p1331 = pneg %p1330
      $region74: #{tpu_custom_call.1} parent=5 // pred_check_branch
        %1333 = sbr.rel (%p1331) target = $region76
      $region75: #{tpu_custom_call.1} parent=5 // pred_region
        %s1334 = ssub.s32 %s21, 2
        // Predicated region
        $region77: #{tpu_custom_call.1} parent=75 // pred_check
          %p1335 = pneg %p347
        $region78: #{tpu_custom_call.1} parent=75 // pred_check_branch
          %1337 = sbr.rel (%p1335) target = $region80
        $region79: #{tpu_custom_call.1} parent=75 // pred_region
          %s1338 = sand.u32 %s332, 1
          %s1339 = scalar_lea.sflag [#allocation3], %s1338
          %s1340 = sand.u32 %s332, 1
          %s1341 = smul.addr %s1340, 32
          %s1342 = scalar_lea.vmem [#allocation2], %s1341
          %1343 = dma.done %s1339, 512
        $region80: #{tpu_custom_call.1} parent=75 // pred_fallthru
          _
      $region76: #{tpu_custom_call.1} parent=5 // pred_fallthru
        _
    $region6: #{tpu_custom_call.1} parent=1 // loop_footer
      %s25 = sadd.s32 1, %s21
    $region7: #{tpu_custom_call.1} parent=1 // loop_footer_branch
      %20 = sbr.rel target = $region3
    $region8: #{tpu_custom_call.1} parent=1 // loop_exit
      _
    %1344 = vsyncpa [#allocation3], 1
    %s1345 = scalar_lea.sflag [#allocation3], 1
    %1346 = vsyncpa %s1345, 1

</llo_original>
